<compile_context>
chip_gen: v7x
topology: tpu7x:2x2x1
jax: 0.10.0
libtpu: 0.0.40
codegen_flags: <defaults>
</compile_context>

<pallas_src>
import functools
import math

import jax
import jax.numpy as jnp
import numpy as np
from jax import lax
from jax.experimental import pallas as pl
from jax.experimental.pallas import tpu as pltpu


def _sdpa_kernel(q_ref, k_ref, v_ref, out_ref, attn_ref, *, inv_sqrt_dk, G):
    """One grid step = G (batch*head) slices.

    q_ref: (G, Lq, Dk), k_ref: (G, Lk, Dk), v_ref: (G, Lk, Dv)
    out_ref:  (1, Lq, G*Dv)  -- heads folded into the lane axis (lane-dense store)
    attn_ref: (1, 1,  G*Lk)  -- pre-softmax last query row, heads folded into lanes
    """
    out_cols = []
    attn_cols = []
    # Static unroll over the heads of this step; each iteration is one small MXU
    # pass (the batched einsum would lower to G sub-128 passes anyway).  G is
    # capped in the wrapper so the unroll stays bounded.
    for g in range(G):
        q_g = q_ref[g]  # (Lq, Dk) native dtype -> MXU
        k_g = k_ref[g]  # (Lk, Dk)
        v_g = v_ref[g]  # (Lk, Dv)

        # QK^T contracting the last dims of both operands (no explicit transpose);
        # native dtype in, f32 accumulation out of the MXU.
        s = lax.dot_general(
            q_g, k_g, (((1,), (1,)), ((), ())),
            preferred_element_type=jnp.float32,
        )  # (Lq, Lk) f32

        # Scale the f32 scores (not q): cheaper for Lk < Dk and avoids rounding
        # q in a low-precision input dtype before the MXU.
        s = s * inv_sqrt_dk

        # The module only returns attn[:, :, -1] (pre-softmax last query row;
        # dropout is identity in eval mode) -> keep just that row.
        attn_cols.append(s[-1:, :])  # (1, Lk)

        # Numerically-stable softmax over keys; exact division (EUP has slack,
        # approx reciprocal would only cost accuracy here).
        m = jnp.max(s, axis=-1, keepdims=True)
        p = jnp.exp(s - m)
        p = p / jnp.sum(p, axis=-1, keepdims=True)

        # softmax(scores) @ v ; probabilities cast back to the MXU-native dtype.
        o = jnp.dot(p.astype(v_g.dtype), v_g, preferred_element_type=jnp.float32)
        out_cols.append(o)  # (Lq, Dv) f32

    # Lane-dense epilogue: concatenate per-head results along the lane axis so
    # each output is written with one wide store instead of G masked narrow ones.
    out2d = jnp.concatenate(out_cols, axis=-1)     # (Lq, G*Dv)
    attn2d = jnp.concatenate(attn_cols, axis=-1)   # (1, G*Lk)
    out_ref[0] = out2d.astype(out_ref.dtype)
    attn_ref[0] = attn2d.astype(attn_ref.dtype)


def _device_kind():
    try:
        return jax.devices()[0].device_kind.lower()
    except Exception:
        return ""


def _num_tensorcores(kind):
    # v7x has 2 TensorCores per chip; v5e/v6e have 1.  The grid is a serial loop
    # on one TC, so only force a multi-step grid when cores can actually share it.
    return 2 if "v7" in kind else 1


def _vmem_capacity_bytes(kind):
    # Generation-aware VMEM capacity: prefer the runtime query, fall back to a
    # device-kind heuristic (v7x: 64 MiB per TC, v5e/v6e: 128 MiB).
    try:
        info = pltpu.get_tpu_info()
        cap = getattr(info, "vmem_capacity_bytes", None)
        if cap:
            return int(cap)
    except Exception:
        pass
    return (64 if "v7" in kind else 128) * 1024 * 1024


def _pick_group_size(BH, per_head_bytes, budget_bytes, num_tc, max_unroll=32):
    """Largest divisor of BH whose per-step footprint fits the VMEM budget.
    On multi-TC parts the grid keeps >= num_tc steps so the cores split work;
    on single-TC parts the whole problem collapses into one grid step."""
    limit = max(1, budget_bytes // max(1, per_head_bytes))
    limit = min(limit, max_unroll, BH)
    if num_tc >= 2 and BH >= num_tc:
        limit = min(limit, BH // num_tc)
    g = 1
    for cand in range(2, int(limit) + 1):
        if BH % cand == 0:
            g = cand
    return g


def scaled_dot_product_attention(q, k, v):
    """q: [B,H,Lq,Dk], k: [B,H,Lk,Dk], v: [B,H,Lk,Dv]
       -> (output [B,H,Lq,Dv], attn [B,H,Lk])  (matches the torch module,
       eval mode, scale=None, attn_mask=None)."""
    B, H, Lq, Dk = q.shape
    _, _, Lk, Dv = v.shape
    BH = B * H

    qf = q.reshape(BH, Lq, Dk)
    kf = k.reshape(BH, Lk, Dk)
    vf = v.reshape(BH, Lk, Dv)

    kind = _device_kind()
    num_tc = _num_tensorcores(kind)
    vmem_cap = _vmem_capacity_bytes(kind)

    itemsize = jnp.dtype(q.dtype).itemsize
    # Per-(batch,head) VMEM footprint: double-buffered pipelined inputs/outputs
    # plus the f32 intermediates (scores, probabilities, PV accumulator) that are
    # live during compute (these are NOT pipelined, so counted once).
    pipelined = 2 * ((Lq * Dk + Lk * Dk + Lk * Dv) + (Lq * Dv + Lk)) * itemsize
    live_f32 = (2 * Lq * Lk + Lq * Dv) * 4
    per_head_bytes = pipelined + live_f32

    budget = vmem_cap // 4  # headroom for compiler scratch / semaphores
    G = _pick_group_size(BH, per_head_bytes, budget, num_tc)
    steps = BH // G

    vmem_limit = int(min(vmem_cap * 3 // 4,
                         max(32 * 1024 * 1024, 4 * G * per_head_bytes)))

    flops = 2 * BH * Lq * Lk * (Dk + Dv)
    bytes_accessed = (qf.size + kf.size + vf.size
                      + BH * Lq * Dv + BH * Lk) * itemsize
    cost = pl.CostEstimate(flops=flops,
                           transcendentals=BH * Lq * Lk,
                           bytes_accessed=bytes_accessed)

    out_flat, attn_flat = pl.pallas_call(
        functools.partial(_sdpa_kernel, inv_sqrt_dk=1.0 / math.sqrt(Dk), G=G),
        out_shape=(
            jax.ShapeDtypeStruct((steps, Lq, G * Dv), q.dtype),
            jax.ShapeDtypeStruct((steps, 1, G * Lk), q.dtype),
        ),
        grid_spec=pltpu.PrefetchScalarGridSpec(
            num_scalar_prefetch=0,
            grid=(steps,),
            in_specs=[
                pl.BlockSpec((G, Lq, Dk), lambda i: (i, 0, 0)),
                pl.BlockSpec((G, Lk, Dk), lambda i: (i, 0, 0)),
                pl.BlockSpec((G, Lk, Dv), lambda i: (i, 0, 0)),
            ],
            out_specs=[
                pl.BlockSpec((1, Lq, G * Dv), lambda i: (i, 0, 0)),
                pl.BlockSpec((1, 1, G * Lk), lambda i: (i, 0, 0)),
            ],
        ),
        compiler_params=pltpu.CompilerParams(
            dimension_semantics=("parallel",),
            vmem_limit_bytes=vmem_limit,
        ),
        cost_estimate=cost,
    )(qf, kf, vf)

    # Undo the head->lane folding with cheap wrapper-side reshape/transpose.
    output = (out_flat.reshape(steps, Lq, G, Dv)
                      .transpose(0, 2, 1, 3)
                      .reshape(B, H, Lq, Dv))
    attn_last = attn_flat.reshape(B, H, Lk)
    return output, attn_last


def _reference(q, k, v):
    d_k = q.shape[-1]
    attn = jnp.einsum("bhqd,bhkd->bhqk", q, k,
                      precision=lax.Precision.HIGHEST) / math.sqrt(d_k)
    out = jnp.einsum("bhqk,bhkd->bhqd", jax.nn.softmax(attn, axis=-1), v,
                     precision=lax.Precision.HIGHEST)
    return out, attn[:, :, -1]


if __name__ == "__main__":
    # small shapes implied by the module: batched multi-head attention
    B, H, Lq, Lk, Dk, Dv = 2, 4, 8, 8, 32, 32
    key = jax.random.PRNGKey(0)
    kq, kk, kv = jax.random.split(key, 3)
    q = jax.random.normal(kq, (B, H, Lq, Dk), dtype=jnp.float32)
    k = jax.random.normal(kk, (B, H, Lk, Dk), dtype=jnp.float32)
    v = jax.random.normal(kv, (B, H, Lk, Dv), dtype=jnp.float32)

    out, attn = scaled_dot_product_attention(q, k, v)
    jax.block_until_ready((out, attn))

    out_ref, attn_ref = _reference(q, k, v)
    # exact softmax division now -> tight parity with the f32 reference
    np.testing.assert_allclose(np.asarray(out), np.asarray(out_ref),
                               rtol=5e-5, atol=5e-5)
    np.testing.assert_allclose(np.asarray(attn), np.asarray(attn_ref),
                               rtol=5e-5, atol=5e-5)

    print("KERNEL_OK")
</pallas_src>

<mosaic_0001>
module attributes {stable_mosaic.version = 11 : i64} {
  func.func @_sdpa_kernel(%arg0: i32, %arg1: memref<8x8x32xf32, #tpu.memory_space<vmem>>, %arg2: memref<8x8x32xf32, #tpu.memory_space<vmem>>, %arg3: memref<8x8x32xf32, #tpu.memory_space<vmem>>, %arg4: memref<1x8x256xf32, #tpu.memory_space<vmem>>, %arg5: memref<1x1x64xf32, #tpu.memory_space<vmem>>) attributes {dimension_semantics = [#tpu.dimension_semantics<parallel>], iteration_bounds = array<i64: 1>, scalar_prefetch = 0 : i64, scratch_operands = 0 : i64, tpu.core_type = #tpu.core_type<tc>, window_params = [{transform_indices = @transform_0, window_bounds = array<i64: 8, 8, 32>}, {transform_indices = @transform_1, window_bounds = array<i64: 8, 8, 32>}, {transform_indices = @transform_2, window_bounds = array<i64: 8, 8, 32>}, {transform_indices = @transform_3, window_bounds = array<i64: 1, 8, 256>}, {transform_indices = @transform_4, window_bounds = array<i64: 1, 1, 64>}]} {
    %c0 = arith.constant 0 : index
    %c0_0 = arith.constant 0 : index
    %c0_1 = arith.constant 0 : index
    %0 = vector.load %arg1[%c0, %c0_0, %c0_1] : memref<8x8x32xf32, #tpu.memory_space<vmem>>, vector<1x8x32xf32>
    %1 = vector.shape_cast %0 : vector<1x8x32xf32> to vector<8x32xf32>
    %c0_2 = arith.constant 0 : index
    %c0_3 = arith.constant 0 : index
    %c0_4 = arith.constant 0 : index
    %2 = vector.load %arg2[%c0_2, %c0_3, %c0_4] : memref<8x8x32xf32, #tpu.memory_space<vmem>>, vector<1x8x32xf32>
    %3 = vector.shape_cast %2 : vector<1x8x32xf32> to vector<8x32xf32>
    %c0_5 = arith.constant 0 : index
    %c0_6 = arith.constant 0 : index
    %c0_7 = arith.constant 0 : index
    %4 = vector.load %arg3[%c0_5, %c0_6, %c0_7] : memref<8x8x32xf32, #tpu.memory_space<vmem>>, vector<1x8x32xf32>
    %5 = vector.shape_cast %4 : vector<1x8x32xf32> to vector<8x32xf32>
    %cst = arith.constant dense<0.000000e+00> : vector<8x8xf32>
    %6 = tpu.matmul %1, %3, %cst {dimension_numbers = #tpu.dot_dimension_numbers<[1], [1], [0], [0], [0, 0, 1, 0], [], []>} : vector<8x32xf32>, vector<8x32xf32>, vector<8x8xf32> -> vector<8x8xf32>
    %cst_8 = arith.constant 0.176776692 : f32
    %7 = vector.broadcast %cst_8 : f32 to vector<8x8xf32>
    %8 = arith.mulf %6, %7 : vector<8x8xf32>
    %9 = vector.extract_strided_slice %8 {offsets = [7, 0], sizes = [1, 8], strides = [1, 1]} : vector<8x8xf32> to vector<1x8xf32>
    %cst_9 = arith.constant dense<0xFF800000> : vector<8xf32>
    %10 = vector.multi_reduction <maximumf>, %8, %cst_9 [1] : vector<8x8xf32> to vector<8xf32>
    %11 = vector.shape_cast %10 : vector<8xf32> to vector<8x1xf32>
    %12 = vector.broadcast %11 : vector<8x1xf32> to vector<8x8xf32>
    %13 = arith.subf %8, %12 : vector<8x8xf32>
    %14 = math.exp %13 : vector<8x8xf32>
    %cst_10 = arith.constant dense<0.000000e+00> : vector<8xf32>
    %15 = vector.multi_reduction <add>, %14, %cst_10 [1] : vector<8x8xf32> to vector<8xf32>
    %16 = vector.shape_cast %15 : vector<8xf32> to vector<8x1xf32>
    %17 = vector.broadcast %16 : vector<8x1xf32> to vector<8x8xf32>
    %18 = arith.divf %14, %17 : vector<8x8xf32>
    %cst_11 = arith.constant dense<0.000000e+00> : vector<8x32xf32>
    %19 = tpu.matmul %18, %5, %cst_11 {dimension_numbers = #tpu.dot_dimension_numbers<[1], [0], [0], [1], [0, 0, 1, 1], [], []>} : vector<8x8xf32>, vector<8x32xf32>, vector<8x32xf32> -> vector<8x32xf32>
    %c1 = arith.constant 1 : index
    %c0_12 = arith.constant 0 : index
    %c0_13 = arith.constant 0 : index
    %20 = vector.load %arg1[%c1, %c0_12, %c0_13] : memref<8x8x32xf32, #tpu.memory_space<vmem>>, vector<1x8x32xf32>
    %21 = vector.shape_cast %20 : vector<1x8x32xf32> to vector<8x32xf32>
    %c1_14 = arith.constant 1 : index
    %c0_15 = arith.constant 0 : index
    %c0_16 = arith.constant 0 : index
    %22 = vector.load %arg2[%c1_14, %c0_15, %c0_16] : memref<8x8x32xf32, #tpu.memory_space<vmem>>, vector<1x8x32xf32>
    %23 = vector.shape_cast %22 : vector<1x8x32xf32> to vector<8x32xf32>
    %c1_17 = arith.constant 1 : index
    %c0_18 = arith.constant 0 : index
    %c0_19 = arith.constant 0 : index
    %24 = vector.load %arg3[%c1_17, %c0_18, %c0_19] : memref<8x8x32xf32, #tpu.memory_space<vmem>>, vector<1x8x32xf32>
    %25 = vector.shape_cast %24 : vector<1x8x32xf32> to vector<8x32xf32>
    %cst_20 = arith.constant dense<0.000000e+00> : vector<8x8xf32>
    %26 = tpu.matmul %21, %23, %cst_20 {dimension_numbers = #tpu.dot_dimension_numbers<[1], [1], [0], [0], [0, 0, 1, 0], [], []>} : vector<8x32xf32>, vector<8x32xf32>, vector<8x8xf32> -> vector<8x8xf32>
    %cst_21 = arith.constant 0.176776692 : f32
    %27 = vector.broadcast %cst_21 : f32 to vector<8x8xf32>
    %28 = arith.mulf %26, %27 : vector<8x8xf32>
    %29 = vector.extract_strided_slice %28 {offsets = [7, 0], sizes = [1, 8], strides = [1, 1]} : vector<8x8xf32> to vector<1x8xf32>
    %cst_22 = arith.constant dense<0xFF800000> : vector<8xf32>
    %30 = vector.multi_reduction <maximumf>, %28, %cst_22 [1] : vector<8x8xf32> to vector<8xf32>
    %31 = vector.shape_cast %30 : vector<8xf32> to vector<8x1xf32>
    %32 = vector.broadcast %31 : vector<8x1xf32> to vector<8x8xf32>
    %33 = arith.subf %28, %32 : vector<8x8xf32>
    %34 = math.exp %33 : vector<8x8xf32>
    %cst_23 = arith.constant dense<0.000000e+00> : vector<8xf32>
    %35 = vector.multi_reduction <add>, %34, %cst_23 [1] : vector<8x8xf32> to vector<8xf32>
    %36 = vector.shape_cast %35 : vector<8xf32> to vector<8x1xf32>
    %37 = vector.broadcast %36 : vector<8x1xf32> to vector<8x8xf32>
    %38 = arith.divf %34, %37 : vector<8x8xf32>
    %cst_24 = arith.constant dense<0.000000e+00> : vector<8x32xf32>
    %39 = tpu.matmul %38, %25, %cst_24 {dimension_numbers = #tpu.dot_dimension_numbers<[1], [0], [0], [1], [0, 0, 1, 1], [], []>} : vector<8x8xf32>, vector<8x32xf32>, vector<8x32xf32> -> vector<8x32xf32>
    %c2 = arith.constant 2 : index
    %c0_25 = arith.constant 0 : index
    %c0_26 = arith.constant 0 : index
    %40 = vector.load %arg1[%c2, %c0_25, %c0_26] : memref<8x8x32xf32, #tpu.memory_space<vmem>>, vector<1x8x32xf32>
    %41 = vector.shape_cast %40 : vector<1x8x32xf32> to vector<8x32xf32>
    %c2_27 = arith.constant 2 : index
    %c0_28 = arith.constant 0 : index
    %c0_29 = arith.constant 0 : index
    %42 = vector.load %arg2[%c2_27, %c0_28, %c0_29] : memref<8x8x32xf32, #tpu.memory_space<vmem>>, vector<1x8x32xf32>
    %43 = vector.shape_cast %42 : vector<1x8x32xf32> to vector<8x32xf32>
    %c2_30 = arith.constant 2 : index
    %c0_31 = arith.constant 0 : index
    %c0_32 = arith.constant 0 : index
    %44 = vector.load %arg3[%c2_30, %c0_31, %c0_32] : memref<8x8x32xf32, #tpu.memory_space<vmem>>, vector<1x8x32xf32>
    %45 = vector.shape_cast %44 : vector<1x8x32xf32> to vector<8x32xf32>
    %cst_33 = arith.constant dense<0.000000e+00> : vector<8x8xf32>
    %46 = tpu.matmul %41, %43, %cst_33 {dimension_numbers = #tpu.dot_dimension_numbers<[1], [1], [0], [0], [0, 0, 1, 0], [], []>} : vector<8x32xf32>, vector<8x32xf32>, vector<8x8xf32> -> vector<8x8xf32>
    %cst_34 = arith.constant 0.176776692 : f32
    %47 = vector.broadcast %cst_34 : f32 to vector<8x8xf32>
    %48 = arith.mulf %46, %47 : vector<8x8xf32>
    %49 = vector.extract_strided_slice %48 {offsets = [7, 0], sizes = [1, 8], strides = [1, 1]} : vector<8x8xf32> to vector<1x8xf32>
    %cst_35 = arith.constant dense<0xFF800000> : vector<8xf32>
    %50 = vector.multi_reduction <maximumf>, %48, %cst_35 [1] : vector<8x8xf32> to vector<8xf32>
    %51 = vector.shape_cast %50 : vector<8xf32> to vector<8x1xf32>
    %52 = vector.broadcast %51 : vector<8x1xf32> to vector<8x8xf32>
    %53 = arith.subf %48, %52 : vector<8x8xf32>
    %54 = math.exp %53 : vector<8x8xf32>
    %cst_36 = arith.constant dense<0.000000e+00> : vector<8xf32>
    %55 = vector.multi_reduction <add>, %54, %cst_36 [1] : vector<8x8xf32> to vector<8xf32>
    %56 = vector.shape_cast %55 : vector<8xf32> to vector<8x1xf32>
    %57 = vector.broadcast %56 : vector<8x1xf32> to vector<8x8xf32>
    %58 = arith.divf %54, %57 : vector<8x8xf32>
    %cst_37 = arith.constant dense<0.000000e+00> : vector<8x32xf32>
    %59 = tpu.matmul %58, %45, %cst_37 {dimension_numbers = #tpu.dot_dimension_numbers<[1], [0], [0], [1], [0, 0, 1, 1], [], []>} : vector<8x8xf32>, vector<8x32xf32>, vector<8x32xf32> -> vector<8x32xf32>
    %c3 = arith.constant 3 : index
    %c0_38 = arith.constant 0 : index
    %c0_39 = arith.constant 0 : index
    %60 = vector.load %arg1[%c3, %c0_38, %c0_39] : memref<8x8x32xf32, #tpu.memory_space<vmem>>, vector<1x8x32xf32>
    %61 = vector.shape_cast %60 : vector<1x8x32xf32> to vector<8x32xf32>
    %c3_40 = arith.constant 3 : index
    %c0_41 = arith.constant 0 : index
    %c0_42 = arith.constant 0 : index
    %62 = vector.load %arg2[%c3_40, %c0_41, %c0_42] : memref<8x8x32xf32, #tpu.memory_space<vmem>>, vector<1x8x32xf32>
    %63 = vector.shape_cast %62 : vector<1x8x32xf32> to vector<8x32xf32>
    %c3_43 = arith.constant 3 : index
    %c0_44 = arith.constant 0 : index
    %c0_45 = arith.constant 0 : index
    %64 = vector.load %arg3[%c3_43, %c0_44, %c0_45] : memref<8x8x32xf32, #tpu.memory_space<vmem>>, vector<1x8x32xf32>
    %65 = vector.shape_cast %64 : vector<1x8x32xf32> to vector<8x32xf32>
    %cst_46 = arith.constant dense<0.000000e+00> : vector<8x8xf32>
    %66 = tpu.matmul %61, %63, %cst_46 {dimension_numbers = #tpu.dot_dimension_numbers<[1], [1], [0], [0], [0, 0, 1, 0], [], []>} : vector<8x32xf32>, vector<8x32xf32>, vector<8x8xf32> -> vector<8x8xf32>
    %cst_47 = arith.constant 0.176776692 : f32
    %67 = vector.broadcast %cst_47 : f32 to vector<8x8xf32>
    %68 = arith.mulf %66, %67 : vector<8x8xf32>
    %69 = vector.extract_strided_slice %68 {offsets = [7, 0], sizes = [1, 8], strides = [1, 1]} : vector<8x8xf32> to vector<1x8xf32>
    %cst_48 = arith.constant dense<0xFF800000> : vector<8xf32>
    %70 = vector.multi_reduction <maximumf>, %68, %cst_48 [1] : vector<8x8xf32> to vector<8xf32>
    %71 = vector.shape_cast %70 : vector<8xf32> to vector<8x1xf32>
    %72 = vector.broadcast %71 : vector<8x1xf32> to vector<8x8xf32>
    %73 = arith.subf %68, %72 : vector<8x8xf32>
    %74 = math.exp %73 : vector<8x8xf32>
    %cst_49 = arith.constant dense<0.000000e+00> : vector<8xf32>
    %75 = vector.multi_reduction <add>, %74, %cst_49 [1] : vector<8x8xf32> to vector<8xf32>
    %76 = vector.shape_cast %75 : vector<8xf32> to vector<8x1xf32>
    %77 = vector.broadcast %76 : vector<8x1xf32> to vector<8x8xf32>
    %78 = arith.divf %74, %77 : vector<8x8xf32>
    %cst_50 = arith.constant dense<0.000000e+00> : vector<8x32xf32>
    %79 = tpu.matmul %78, %65, %cst_50 {dimension_numbers = #tpu.dot_dimension_numbers<[1], [0], [0], [1], [0, 0, 1, 1], [], []>} : vector<8x8xf32>, vector<8x32xf32>, vector<8x32xf32> -> vector<8x32xf32>
    %c4 = arith.constant 4 : index
    %c0_51 = arith.constant 0 : index
    %c0_52 = arith.constant 0 : index
    %80 = vector.load %arg1[%c4, %c0_51, %c0_52] : memref<8x8x32xf32, #tpu.memory_space<vmem>>, vector<1x8x32xf32>
    %81 = vector.shape_cast %80 : vector<1x8x32xf32> to vector<8x32xf32>
    %c4_53 = arith.constant 4 : index
    %c0_54 = arith.constant 0 : index
    %c0_55 = arith.constant 0 : index
    %82 = vector.load %arg2[%c4_53, %c0_54, %c0_55] : memref<8x8x32xf32, #tpu.memory_space<vmem>>, vector<1x8x32xf32>
    %83 = vector.shape_cast %82 : vector<1x8x32xf32> to vector<8x32xf32>
    %c4_56 = arith.constant 4 : index
    %c0_57 = arith.constant 0 : index
    %c0_58 = arith.constant 0 : index
    %84 = vector.load %arg3[%c4_56, %c0_57, %c0_58] : memref<8x8x32xf32, #tpu.memory_space<vmem>>, vector<1x8x32xf32>
    %85 = vector.shape_cast %84 : vector<1x8x32xf32> to vector<8x32xf32>
    %cst_59 = arith.constant dense<0.000000e+00> : vector<8x8xf32>
    %86 = tpu.matmul %81, %83, %cst_59 {dimension_numbers = #tpu.dot_dimension_numbers<[1], [1], [0], [0], [0, 0, 1, 0], [], []>} : vector<8x32xf32>, vector<8x32xf32>, vector<8x8xf32> -> vector<8x8xf32>
    %cst_60 = arith.constant 0.176776692 : f32
    %87 = vector.broadcast %cst_60 : f32 to vector<8x8xf32>
    %88 = arith.mulf %86, %87 : vector<8x8xf32>
    %89 = vector.extract_strided_slice %88 {offsets = [7, 0], sizes = [1, 8], strides = [1, 1]} : vector<8x8xf32> to vector<1x8xf32>
    %cst_61 = arith.constant dense<0xFF800000> : vector<8xf32>
    %90 = vector.multi_reduction <maximumf>, %88, %cst_61 [1] : vector<8x8xf32> to vector<8xf32>
    %91 = vector.shape_cast %90 : vector<8xf32> to vector<8x1xf32>
    %92 = vector.broadcast %91 : vector<8x1xf32> to vector<8x8xf32>
    %93 = arith.subf %88, %92 : vector<8x8xf32>
    %94 = math.exp %93 : vector<8x8xf32>
    %cst_62 = arith.constant dense<0.000000e+00> : vector<8xf32>
    %95 = vector.multi_reduction <add>, %94, %cst_62 [1] : vector<8x8xf32> to vector<8xf32>
    %96 = vector.shape_cast %95 : vector<8xf32> to vector<8x1xf32>
    %97 = vector.broadcast %96 : vector<8x1xf32> to vector<8x8xf32>
    %98 = arith.divf %94, %97 : vector<8x8xf32>
    %cst_63 = arith.constant dense<0.000000e+00> : vector<8x32xf32>
    %99 = tpu.matmul %98, %85, %cst_63 {dimension_numbers = #tpu.dot_dimension_numbers<[1], [0], [0], [1], [0, 0, 1, 1], [], []>} : vector<8x8xf32>, vector<8x32xf32>, vector<8x32xf32> -> vector<8x32xf32>
    %c5 = arith.constant 5 : index
    %c0_64 = arith.constant 0 : index
    %c0_65 = arith.constant 0 : index
    %100 = vector.load %arg1[%c5, %c0_64, %c0_65] : memref<8x8x32xf32, #tpu.memory_space<vmem>>, vector<1x8x32xf32>
    %101 = vector.shape_cast %100 : vector<1x8x32xf32> to vector<8x32xf32>
    %c5_66 = arith.constant 5 : index
    %c0_67 = arith.constant 0 : index
    %c0_68 = arith.constant 0 : index
    %102 = vector.load %arg2[%c5_66, %c0_67, %c0_68] : memref<8x8x32xf32, #tpu.memory_space<vmem>>, vector<1x8x32xf32>
    %103 = vector.shape_cast %102 : vector<1x8x32xf32> to vector<8x32xf32>
    %c5_69 = arith.constant 5 : index
    %c0_70 = arith.constant 0 : index
    %c0_71 = arith.constant 0 : index
    %104 = vector.load %arg3[%c5_69, %c0_70, %c0_71] : memref<8x8x32xf32, #tpu.memory_space<vmem>>, vector<1x8x32xf32>
    %105 = vector.shape_cast %104 : vector<1x8x32xf32> to vector<8x32xf32>
    %cst_72 = arith.constant dense<0.000000e+00> : vector<8x8xf32>
    %106 = tpu.matmul %101, %103, %cst_72 {dimension_numbers = #tpu.dot_dimension_numbers<[1], [1], [0], [0], [0, 0, 1, 0], [], []>} : vector<8x32xf32>, vector<8x32xf32>, vector<8x8xf32> -> vector<8x8xf32>
    %cst_73 = arith.constant 0.176776692 : f32
    %107 = vector.broadcast %cst_73 : f32 to vector<8x8xf32>
    %108 = arith.mulf %106, %107 : vector<8x8xf32>
    %109 = vector.extract_strided_slice %108 {offsets = [7, 0], sizes = [1, 8], strides = [1, 1]} : vector<8x8xf32> to vector<1x8xf32>
    %cst_74 = arith.constant dense<0xFF800000> : vector<8xf32>
    %110 = vector.multi_reduction <maximumf>, %108, %cst_74 [1] : vector<8x8xf32> to vector<8xf32>
    %111 = vector.shape_cast %110 : vector<8xf32> to vector<8x1xf32>
    %112 = vector.broadcast %111 : vector<8x1xf32> to vector<8x8xf32>
    %113 = arith.subf %108, %112 : vector<8x8xf32>
    %114 = math.exp %113 : vector<8x8xf32>
    %cst_75 = arith.constant dense<0.000000e+00> : vector<8xf32>
    %115 = vector.multi_reduction <add>, %114, %cst_75 [1] : vector<8x8xf32> to vector<8xf32>
    %116 = vector.shape_cast %115 : vector<8xf32> to vector<8x1xf32>
    %117 = vector.broadcast %116 : vector<8x1xf32> to vector<8x8xf32>
    %118 = arith.divf %114, %117 : vector<8x8xf32>
    %cst_76 = arith.constant dense<0.000000e+00> : vector<8x32xf32>
    %119 = tpu.matmul %118, %105, %cst_76 {dimension_numbers = #tpu.dot_dimension_numbers<[1], [0], [0], [1], [0, 0, 1, 1], [], []>} : vector<8x8xf32>, vector<8x32xf32>, vector<8x32xf32> -> vector<8x32xf32>
    %c6 = arith.constant 6 : index
    %c0_77 = arith.constant 0 : index
    %c0_78 = arith.constant 0 : index
    %120 = vector.load %arg1[%c6, %c0_77, %c0_78] : memref<8x8x32xf32, #tpu.memory_space<vmem>>, vector<1x8x32xf32>
    %121 = vector.shape_cast %120 : vector<1x8x32xf32> to vector<8x32xf32>
    %c6_79 = arith.constant 6 : index
    %c0_80 = arith.constant 0 : index
    %c0_81 = arith.constant 0 : index
    %122 = vector.load %arg2[%c6_79, %c0_80, %c0_81] : memref<8x8x32xf32, #tpu.memory_space<vmem>>, vector<1x8x32xf32>
    %123 = vector.shape_cast %122 : vector<1x8x32xf32> to vector<8x32xf32>
    %c6_82 = arith.constant 6 : index
    %c0_83 = arith.constant 0 : index
    %c0_84 = arith.constant 0 : index
    %124 = vector.load %arg3[%c6_82, %c0_83, %c0_84] : memref<8x8x32xf32, #tpu.memory_space<vmem>>, vector<1x8x32xf32>
    %125 = vector.shape_cast %124 : vector<1x8x32xf32> to vector<8x32xf32>
    %cst_85 = arith.constant dense<0.000000e+00> : vector<8x8xf32>
    %126 = tpu.matmul %121, %123, %cst_85 {dimension_numbers = #tpu.dot_dimension_numbers<[1], [1], [0], [0], [0, 0, 1, 0], [], []>} : vector<8x32xf32>, vector<8x32xf32>, vector<8x8xf32> -> vector<8x8xf32>
    %cst_86 = arith.constant 0.176776692 : f32
    %127 = vector.broadcast %cst_86 : f32 to vector<8x8xf32>
    %128 = arith.mulf %126, %127 : vector<8x8xf32>
    %129 = vector.extract_strided_slice %128 {offsets = [7, 0], sizes = [1, 8], strides = [1, 1]} : vector<8x8xf32> to vector<1x8xf32>
    %cst_87 = arith.constant dense<0xFF800000> : vector<8xf32>
    %130 = vector.multi_reduction <maximumf>, %128, %cst_87 [1] : vector<8x8xf32> to vector<8xf32>
    %131 = vector.shape_cast %130 : vector<8xf32> to vector<8x1xf32>
    %132 = vector.broadcast %131 : vector<8x1xf32> to vector<8x8xf32>
    %133 = arith.subf %128, %132 : vector<8x8xf32>
    %134 = math.exp %133 : vector<8x8xf32>
    %cst_88 = arith.constant dense<0.000000e+00> : vector<8xf32>
    %135 = vector.multi_reduction <add>, %134, %cst_88 [1] : vector<8x8xf32> to vector<8xf32>
    %136 = vector.shape_cast %135 : vector<8xf32> to vector<8x1xf32>
    %137 = vector.broadcast %136 : vector<8x1xf32> to vector<8x8xf32>
    %138 = arith.divf %134, %137 : vector<8x8xf32>
    %cst_89 = arith.constant dense<0.000000e+00> : vector<8x32xf32>
    %139 = tpu.matmul %138, %125, %cst_89 {dimension_numbers = #tpu.dot_dimension_numbers<[1], [0], [0], [1], [0, 0, 1, 1], [], []>} : vector<8x8xf32>, vector<8x32xf32>, vector<8x32xf32> -> vector<8x32xf32>
    %c7 = arith.constant 7 : index
    %c0_90 = arith.constant 0 : index
    %c0_91 = arith.constant 0 : index
    %140 = vector.load %arg1[%c7, %c0_90, %c0_91] : memref<8x8x32xf32, #tpu.memory_space<vmem>>, vector<1x8x32xf32>
    %141 = vector.shape_cast %140 : vector<1x8x32xf32> to vector<8x32xf32>
    %c7_92 = arith.constant 7 : index
    %c0_93 = arith.constant 0 : index
    %c0_94 = arith.constant 0 : index
    %142 = vector.load %arg2[%c7_92, %c0_93, %c0_94] : memref<8x8x32xf32, #tpu.memory_space<vmem>>, vector<1x8x32xf32>
    %143 = vector.shape_cast %142 : vector<1x8x32xf32> to vector<8x32xf32>
    %c7_95 = arith.constant 7 : index
    %c0_96 = arith.constant 0 : index
    %c0_97 = arith.constant 0 : index
    %144 = vector.load %arg3[%c7_95, %c0_96, %c0_97] : memref<8x8x32xf32, #tpu.memory_space<vmem>>, vector<1x8x32xf32>
    %145 = vector.shape_cast %144 : vector<1x8x32xf32> to vector<8x32xf32>
    %cst_98 = arith.constant dense<0.000000e+00> : vector<8x8xf32>
    %146 = tpu.matmul %141, %143, %cst_98 {dimension_numbers = #tpu.dot_dimension_numbers<[1], [1], [0], [0], [0, 0, 1, 0], [], []>} : vector<8x32xf32>, vector<8x32xf32>, vector<8x8xf32> -> vector<8x8xf32>
    %cst_99 = arith.constant 0.176776692 : f32
    %147 = vector.broadcast %cst_99 : f32 to vector<8x8xf32>
    %148 = arith.mulf %146, %147 : vector<8x8xf32>
    %149 = vector.extract_strided_slice %148 {offsets = [7, 0], sizes = [1, 8], strides = [1, 1]} : vector<8x8xf32> to vector<1x8xf32>
    %cst_100 = arith.constant dense<0xFF800000> : vector<8xf32>
    %150 = vector.multi_reduction <maximumf>, %148, %cst_100 [1] : vector<8x8xf32> to vector<8xf32>
    %151 = vector.shape_cast %150 : vector<8xf32> to vector<8x1xf32>
    %152 = vector.broadcast %151 : vector<8x1xf32> to vector<8x8xf32>
    %153 = arith.subf %148, %152 : vector<8x8xf32>
    %154 = math.exp %153 : vector<8x8xf32>
    %cst_101 = arith.constant dense<0.000000e+00> : vector<8xf32>
    %155 = vector.multi_reduction <add>, %154, %cst_101 [1] : vector<8x8xf32> to vector<8xf32>
    %156 = vector.shape_cast %155 : vector<8xf32> to vector<8x1xf32>
    %157 = vector.broadcast %156 : vector<8x1xf32> to vector<8x8xf32>
    %158 = arith.divf %154, %157 : vector<8x8xf32>
    %cst_102 = arith.constant dense<0.000000e+00> : vector<8x32xf32>
    %159 = tpu.matmul %158, %145, %cst_102 {dimension_numbers = #tpu.dot_dimension_numbers<[1], [0], [0], [1], [0, 0, 1, 1], [], []>} : vector<8x8xf32>, vector<8x32xf32>, vector<8x32xf32> -> vector<8x32xf32>
    %160 = tpu.concatenate %19, %39, %59, %79, %99, %119, %139, %159 in 1 : vector<8x32xf32>, vector<8x32xf32>, vector<8x32xf32>, vector<8x32xf32>, vector<8x32xf32>, vector<8x32xf32>, vector<8x32xf32>, vector<8x32xf32> -> vector<8x256xf32>
    %161 = tpu.concatenate %9, %29, %49, %69, %89, %109, %129, %149 in 1 : vector<1x8xf32>, vector<1x8xf32>, vector<1x8xf32>, vector<1x8xf32>, vector<1x8xf32>, vector<1x8xf32>, vector<1x8xf32>, vector<1x8xf32> -> vector<1x64xf32>
    %c0_103 = arith.constant 0 : index
    %c0_104 = arith.constant 0 : index
    %c0_105 = arith.constant 0 : index
    %162 = vector.load %arg4[%c0_103, %c0_104, %c0_105] : memref<1x8x256xf32, #tpu.memory_space<vmem>>, vector<1x8x256xf32>
    %163 = vector.shape_cast %162 : vector<1x8x256xf32> to vector<8x256xf32>
    %164 = vector.shape_cast %160 : vector<8x256xf32> to vector<1x8x256xf32>
    tpu.vector_store %arg4[%c0_103, %c0_104, %c0_105], %164 {strides = array<i32>} : memref<1x8x256xf32, #tpu.memory_space<vmem>>, vector<1x8x256xf32>,
    %c0_106 = arith.constant 0 : index
    %c0_107 = arith.constant 0 : index
    %c0_108 = arith.constant 0 : index
    %165 = vector.load %arg5[%c0_106, %c0_107, %c0_108] : memref<1x1x64xf32, #tpu.memory_space<vmem>>, vector<1x1x64xf32>
    %166 = vector.shape_cast %165 : vector<1x1x64xf32> to vector<1x64xf32>
    %167 = vector.shape_cast %161 : vector<1x64xf32> to vector<1x1x64xf32>
    tpu.vector_store %arg5[%c0_106, %c0_107, %c0_108], %167 {strides = array<i32>} : memref<1x1x64xf32, #tpu.memory_space<vmem>>, vector<1x1x64xf32>,
    return
  }
  func.func @transform_0(%arg0: i32) -> (i32, i32, i32) {
    %c0_i32 = arith.constant 0 : i32
    %c0_i32_0 = arith.constant 0 : i32
    %c0_i32_1 = arith.constant 0 : i32
    return %arg0, %c0_i32, %c0_i32_0 : i32, i32, i32
  }
  func.func @transform_1(%arg0: i32) -> (i32, i32, i32) {
    %c0_i32 = arith.constant 0 : i32
    %c0_i32_0 = arith.constant 0 : i32
    %c0_i32_1 = arith.constant 0 : i32
    return %arg0, %c0_i32, %c0_i32_0 : i32, i32, i32
  }
  func.func @transform_2(%arg0: i32) -> (i32, i32, i32) {
    %c0_i32 = arith.constant 0 : i32
    %c0_i32_0 = arith.constant 0 : i32
    %c0_i32_1 = arith.constant 0 : i32
    return %arg0, %c0_i32, %c0_i32_0 : i32, i32, i32
  }
  func.func @transform_3(%arg0: i32) -> (i32, i32, i32) {
    %c0_i32 = arith.constant 0 : i32
    %c0_i32_0 = arith.constant 0 : i32
    %c0_i32_1 = arith.constant 0 : i32
    return %arg0, %c0_i32, %c0_i32_0 : i32, i32, i32
  }
  func.func @transform_4(%arg0: i32) -> (i32, i32, i32) {
    %c0_i32 = arith.constant 0 : i32
    %c0_i32_0 = arith.constant 0 : i32
    %c0_i32_1 = arith.constant 0 : i32
    return %arg0, %c0_i32, %c0_i32_0 : i32, i32, i32
  }
}

</mosaic_0001>

<llo_original>
// kernel: tpu_custom_call.1
$region0: #{tpu_custom_call.1}
  #allocation0 [shape = 'u32[]', space=smem, size = 0x4, offset = 0x4, fixed_abs, tag = 'smem constant byte address 0x4 - core index']
  #allocation1 [shape = 'u32[144,128]{1,0:T(1,128)}', space=vmem, size = 0x12000, scoped, tag = 'internal scratch']
  %s0 = inlined_call_operand.hbm [shape: f32[8,8,32], index: 0, kind: input, shape index: {}]
  %s1 = inlined_call_operand.hbm [shape: f32[8,8,32], index: 1, kind: input, shape index: {}]
  %s2 = inlined_call_operand.hbm [shape: f32[8,8,32], index: 2, kind: input, shape index: {}]
  %s3 = inlined_call_operand.hbm [shape: f32[1,8,256], index: 3, kind: output, shape index: {0}]
  %s4 = inlined_call_operand.hbm [shape: f32[1,1,64], index: 4, kind: output, shape index: {1}]
  %5 = xla_tuple %s3, %s4
  %s6 = sld [smem:[#allocation0]]
  $region42: #{tpu_custom_call.1} parent=0
    _
  %s8 = ssub.s32 1, %s6
  %s9 = scalar_select 0, %s8, %s6
  $region1: #{tpu_custom_call.1} parent=0
    #allocation2 [shape = 'u8[32768]{0}', space=vmem, size = 0x8000, scoped, tag = 'input window, operand 0, single buffered']
    #allocation3 [shape = 's32[1]{0}', space=sflag, size = 0x4, scoped, tag = 'scoped memory for tpu_custom_call.1']
    #allocation4 [shape = 's32[1]{0}', space=sflag, size = 0x4, scoped, tag = 'scoped memory for tpu_custom_call.1']
    #allocation5 [shape = 'u8[32768]{0}', space=vmem, size = 0x8000, scoped, tag = 'input window, operand 1, single buffered']
    #allocation6 [shape = 's32[1]{0}', space=sflag, size = 0x4, scoped, tag = 'scoped memory for tpu_custom_call.1']
    #allocation7 [shape = 'u8[32768]{0}', space=vmem, size = 0x8000, scoped, tag = 'input window, operand 2, single buffered']
    #allocation8 [shape = 'u8[8192]{0}', space=vmem, size = 0x2000, scoped, tag = 'output window, operand 0, single buffered']
    #allocation9 [shape = 'u8[512]{0}', space=vmem, size = 0x400, scoped, tag = 'output window, operand 1, single buffered']
    #allocation10 [shape = 's32[1]{0}', space=sflag, size = 0x4, scoped, tag = 'scoped memory for tpu_custom_call.1']
    %10 = vsyncpa [#allocation3], 0
    %11 = vsyncpa [#allocation6], 0
    %12 = vsyncpa [#allocation4], 0
    %13 = vsyncpa [#allocation10], 0
    // Predicated region
    $region2: #{tpu_custom_call.1} parent=1 // pred_check
      _
    $region3: #{tpu_custom_call.1} parent=1 // pred_check_branch
      %15 = sbr.rel (0) target = $region5
    $region4: #{tpu_custom_call.1} parent=1 // pred_region
      %s17 = ssub.s32 1024, 1024
      %18 = vsyncadd [#allocation3], %s17
      %s19 = sshll.u32 [#allocation2], 4
      %s20 = int_to_ptr.vmem [resolvable:$true] %s19
      %25 = dma.hbm_to_vmem [thread:$0]  %s0, 1024, %s20, [#allocation3], 128, 128, 8
    $region5: #{tpu_custom_call.1} parent=1 // pred_fallthru
      _
    // Predicated region
    $region6: #{tpu_custom_call.1} parent=1 // pred_check
      _
    $region7: #{tpu_custom_call.1} parent=1 // pred_check_branch
      %27 = sbr.rel (0) target = $region9
    $region8: #{tpu_custom_call.1} parent=1 // pred_region
      %s29 = ssub.s32 1024, 1024
      %30 = vsyncadd [#allocation6], %s29
      %s31 = sshll.u32 [#allocation5], 4
      %s32 = int_to_ptr.vmem [resolvable:$true] %s31
      %37 = dma.hbm_to_vmem [thread:$0]  %s1, 1024, %s32, [#allocation6], 128, 128, 8
    $region9: #{tpu_custom_call.1} parent=1 // pred_fallthru
      _
    // Predicated region
    $region10: #{tpu_custom_call.1} parent=1 // pred_check
      _
    $region11: #{tpu_custom_call.1} parent=1 // pred_check_branch
      %39 = sbr.rel (0) target = $region13
    $region12: #{tpu_custom_call.1} parent=1 // pred_region
      %s41 = ssub.s32 1024, 1024
      %42 = vsyncadd [#allocation6], %s41
      %s43 = sshll.u32 [#allocation7], 4
      %s44 = int_to_ptr.vmem [resolvable:$true] %s43
      %49 = dma.hbm_to_vmem [thread:$0]  %s2, 1024, %s44, [#allocation6], 128, 128, 8
    $region13: #{tpu_custom_call.1} parent=1 // pred_fallthru
      _
    // Predicated region
    $region14: #{tpu_custom_call.1} parent=1 // pred_check
      _
    $region15: #{tpu_custom_call.1} parent=1 // pred_check_branch
      %51 = sbr.rel (0) target = $region17
    $region16: #{tpu_custom_call.1} parent=1 // pred_region
      %52 = dma.done [#allocation3], 1024
    $region17: #{tpu_custom_call.1} parent=1 // pred_fallthru
      _
    // Predicated region
    $region18: #{tpu_custom_call.1} parent=1 // pred_check
      _
    $region19: #{tpu_custom_call.1} parent=1 // pred_check_branch
      %54 = sbr.rel (0) target = $region21
    $region20: #{tpu_custom_call.1} parent=1 // pred_region
      %55 = dma.done [#allocation6], 1024
    $region21: #{tpu_custom_call.1} parent=1 // pred_fallthru
      _
    // Predicated region
    $region22: #{tpu_custom_call.1} parent=1 // pred_check
      _
    $region23: #{tpu_custom_call.1} parent=1 // pred_check_branch
      %57 = sbr.rel (0) target = $region25
    $region24: #{tpu_custom_call.1} parent=1 // pred_region
      %58 = dma.done [#allocation6], 1024
    $region25: #{tpu_custom_call.1} parent=1 // pred_fallthru
      _
    %v59 = vld [vmem:[#allocation2] sm:$0xff]
    %v60 = vld [vmem:[#allocation5] sm:$0xff]
    %v61 = vld [vmem:[#allocation7] sm:$0xff]
    %vm62 = vcmask 261120
    %v64 = vsel %vm62, %v59, 0
    %v67 = vsel %vm62, %v60, 0
    %69 = vmatprep.subr.mxu0 0.0
    %70 = vmatpush1.xpose.msra.mxu0 %v67
    %71 = vmatprep.subr.mxu0 0.0
    %72 = vmatpush1.xpose.msra.mxu0 0.0
    %73 = vmatprep.subr.mxu0 0.0
    %74 = vmatpush1.xpose.msra.mxu0 0.0
    %75 = vmatprep.subr.mxu0 0.0
    %76 = vmatpush1.xpose.msra.mxu0 0.0
    %77 = vmatprep.subr.mxu0 0.0
    %78 = vmatpush1.xpose.msra.mxu0 0.0
    %79 = vmatprep.subr.mxu0 0.0
    %80 = vmatpush1.xpose.msra.mxu0 0.0
    %81 = vmatprep.subr.mxu0 0.0
    %82 = vmatpush1.xpose.msra.mxu0 0.0
    %83 = vmatprep.subr.mxu0 0.0
    %84 = vmatpush1.xpose.msra.mxu0 0.0
    %85 = vmatprep.subr.mxu0 0.0
    %86 = vmatpush1.xpose.msra.mxu0 0.0
    %87 = vmatprep.subr.mxu0 0.0
    %88 = vmatpush1.xpose.msra.mxu0 0.0
    %89 = vmatprep.subr.mxu0 0.0
    %90 = vmatpush1.xpose.msra.mxu0 0.0
    %91 = vmatprep.subr.mxu0 0.0
    %92 = vmatpush1.xpose.msra.mxu0 0.0
    %93 = vmatprep.subr.mxu0 0.0
    %94 = vmatpush1.xpose.msra.mxu0 0.0
    %95 = vmatprep.subr.mxu0 0.0
    %96 = vmatpush1.xpose.msra.mxu0 0.0
    %97 = vmatprep.subr.mxu0 0.0
    %98 = vmatpush1.xpose.msra.mxu0 0.0
    %99 = vmatprep.subr.mxu0 0.0
    %100 = vmatpush1.xpose.msra.mxu0 0.0
    %101 = vmatprep.subr.mxu0 0.0
    %102 = vmatpush1.xpose.msra.mxu0 0.0
    %103 = vmatprep.subr.mxu0 0.0
    %104 = vmatpush1.xpose.msra.mxu0 0.0
    %105 = vmatprep.subr.mxu0 0.0
    %106 = vmatpush1.xpose.msra.mxu0 0.0
    %107 = vmatprep.subr.mxu0 0.0
    %108 = vmatpush1.xpose.msra.mxu0 0.0
    %109 = vmatprep.subr.mxu0 0.0
    %110 = vmatpush1.xpose.msra.mxu0 0.0
    %111 = vmatprep.subr.mxu0 0.0
    %112 = vmatpush1.xpose.msra.mxu0 0.0
    %113 = vmatprep.subr.mxu0 0.0
    %114 = vmatpush1.xpose.msra.mxu0 0.0
    %115 = vmatprep.subr.mxu0 0.0
    %116 = vmatpush1.xpose.msra.mxu0 0.0
    %117 = vmatprep.subr.mxu0 0.0
    %118 = vmatpush1.xpose.msra.mxu0 0.0
    %119 = vmatprep.subr.mxu0 0.0
    %120 = vmatpush1.xpose.msra.mxu0 0.0
    %121 = vmatprep.subr.mxu0 0.0
    %122 = vmatpush1.xpose.msra.mxu0 0.0
    %123 = vmatprep.subr.mxu0 0.0
    %124 = vmatpush1.xpose.msra.mxu0 0.0
    %125 = vmatprep.subr.mxu0 0.0
    %126 = vmatpush1.xpose.msra.mxu0 0.0
    %127 = vmatprep.subr.mxu0 0.0
    %128 = vmatpush1.xpose.msra.mxu0 0.0
    %129 = vmatprep.subr.mxu0 0.0
    %130 = vmatpush1.xpose.msra.mxu0 0.0
    %131 = vmatprep.subr.mxu0 0.0
    %132 = vmatpush1.xpose.msra.mxu0 0.0
    %133 = vmatprep.mubr.f32.mxu0 0.0
    %134 = vmatmul.mubr.f32.gmra.mrb[0].mxu0 %v64
    %v135 = vpop.f32.mrb[0].mxu0
    %v136 = vadd.f32 0.0, %v135
    %v137 = vpop.f32.mrb[0].mxu0
    %138 = vdwg.mxu0
    %v139 = vmul.f32 %v136, 0.17677669
    %vm140 = vcmask 64512
    %v141 = vsel %vm140, %v139, -inf
    %142 = vmax.xlane.f32.xlu0 %v141
    %v143 = vpop.xlane.xlu0 %142
    %v144 = vsub.f32 %v139, %v143
    %v145 = vmul.f32 %v144, 1.442695
    %v146 = vpow.pop %v145
    %v147 = vsel %vm140, %v146, 0.0
    %148 = vadd.xlane.f32.xlu0 %v147
    %v149 = vpop.xlane.xlu0 %148
    %v150 = vrcp.pop %v149
    %v151 = vmul.f32 %v146, %v150
    %v153 = vsel %vm140, %v151, 0
    %155 = vmatprep.subr.mxu0 0.0
    %156 = vmatpush1.msra.mxu0 %v61
    %157 = vmatprep.subr.mxu0 0.0
    %158 = vmatpush1.msra.mxu0 0.0
    %159 = vmatprep.subr.mxu0 0.0
    %160 = vmatpush1.msra.mxu0 0.0
    %161 = vmatprep.subr.mxu0 0.0
    %162 = vmatpush1.msra.mxu0 0.0
    %163 = vmatprep.subr.mxu0 0.0
    %164 = vmatpush1.msra.mxu0 0.0
    %165 = vmatprep.subr.mxu0 0.0
    %166 = vmatpush1.msra.mxu0 0.0
    %167 = vmatprep.subr.mxu0 0.0
    %168 = vmatpush1.msra.mxu0 0.0
    %169 = vmatprep.subr.mxu0 0.0
    %170 = vmatpush1.msra.mxu0 0.0
    %171 = vmatprep.subr.mxu0 0.0
    %172 = vmatpush1.msra.mxu0 0.0
    %173 = vmatprep.subr.mxu0 0.0
    %174 = vmatpush1.msra.mxu0 0.0
    %175 = vmatprep.subr.mxu0 0.0
    %176 = vmatpush1.msra.mxu0 0.0
    %177 = vmatprep.subr.mxu0 0.0
    %178 = vmatpush1.msra.mxu0 0.0
    %179 = vmatprep.subr.mxu0 0.0
    %180 = vmatpush1.msra.mxu0 0.0
    %181 = vmatprep.subr.mxu0 0.0
    %182 = vmatpush1.msra.mxu0 0.0
    %183 = vmatprep.subr.mxu0 0.0
    %184 = vmatpush1.msra.mxu0 0.0
    %185 = vmatprep.subr.mxu0 0.0
    %186 = vmatpush1.msra.mxu0 0.0
    %187 = vmatprep.subr.mxu0 0.0
    %188 = vmatpush1.msra.mxu0 0.0
    %189 = vmatprep.subr.mxu0 0.0
    %190 = vmatpush1.msra.mxu0 0.0
    %191 = vmatprep.subr.mxu0 0.0
    %192 = vmatpush1.msra.mxu0 0.0
    %193 = vmatprep.subr.mxu0 0.0
    %194 = vmatpush1.msra.mxu0 0.0
    %195 = vmatprep.subr.mxu0 0.0
    %196 = vmatpush1.msra.mxu0 0.0
    %197 = vmatprep.subr.mxu0 0.0
    %198 = vmatpush1.msra.mxu0 0.0
    %199 = vmatprep.subr.mxu0 0.0
    %200 = vmatpush1.msra.mxu0 0.0
    %201 = vmatprep.subr.mxu0 0.0
    %202 = vmatpush1.msra.mxu0 0.0
    %203 = vmatprep.subr.mxu0 0.0
    %204 = vmatpush1.msra.mxu0 0.0
    %205 = vmatprep.subr.mxu0 0.0
    %206 = vmatpush1.msra.mxu0 0.0
    %207 = vmatprep.subr.mxu0 0.0
    %208 = vmatpush1.msra.mxu0 0.0
    %209 = vmatprep.subr.mxu0 0.0
    %210 = vmatpush1.msra.mxu0 0.0
    %211 = vmatprep.subr.mxu0 0.0
    %212 = vmatpush1.msra.mxu0 0.0
    %213 = vmatprep.subr.mxu0 0.0
    %214 = vmatpush1.msra.mxu0 0.0
    %215 = vmatprep.subr.mxu0 0.0
    %216 = vmatpush1.msra.mxu0 0.0
    %217 = vmatprep.subr.mxu0 0.0
    %218 = vmatpush1.msra.mxu0 0.0
    %219 = vmatprep.mubr.f32.mxu0 0.0
    %220 = vmatmul.mubr.f32.gmra.mrb[0].mxu0 %v153
    %v221 = vpop.f32.mrb[0].mxu0
    %v222 = vadd.f32 0.0, %v221
    %v223 = vpop.f32.mrb[0].mxu0
    %224 = vdwg.mxu0
    %s225 = scalar_lea.vmem [#allocation2], 8
    %v226 = vld [vmem:[%s225] sm:$0xff]
    %s227 = scalar_lea.vmem [#allocation5], 8
    %v228 = vld [vmem:[%s227] sm:$0xff]
    %s229 = scalar_lea.vmem [#allocation7], 8
    %v230 = vld [vmem:[%s229] sm:$0xff]
    %v232 = vsel %vm62, %v226, 0
    %v235 = vsel %vm62, %v228, 0
    %237 = vmatprep.subr.mxu0 0.0
    %238 = vmatpush1.xpose.msra.mxu0 %v235
    %239 = vmatprep.subr.mxu0 0.0
    %240 = vmatpush1.xpose.msra.mxu0 0.0
    %241 = vmatprep.subr.mxu0 0.0
    %242 = vmatpush1.xpose.msra.mxu0 0.0
    %243 = vmatprep.subr.mxu0 0.0
    %244 = vmatpush1.xpose.msra.mxu0 0.0
    %245 = vmatprep.subr.mxu0 0.0
    %246 = vmatpush1.xpose.msra.mxu0 0.0
    %247 = vmatprep.subr.mxu0 0.0
    %248 = vmatpush1.xpose.msra.mxu0 0.0
    %249 = vmatprep.subr.mxu0 0.0
    %250 = vmatpush1.xpose.msra.mxu0 0.0
    %251 = vmatprep.subr.mxu0 0.0
    %252 = vmatpush1.xpose.msra.mxu0 0.0
    %253 = vmatprep.subr.mxu0 0.0
    %254 = vmatpush1.xpose.msra.mxu0 0.0
    %255 = vmatprep.subr.mxu0 0.0
    %256 = vmatpush1.xpose.msra.mxu0 0.0
    %257 = vmatprep.subr.mxu0 0.0
    %258 = vmatpush1.xpose.msra.mxu0 0.0
    %259 = vmatprep.subr.mxu0 0.0
    %260 = vmatpush1.xpose.msra.mxu0 0.0
    %261 = vmatprep.subr.mxu0 0.0
    %262 = vmatpush1.xpose.msra.mxu0 0.0
    %263 = vmatprep.subr.mxu0 0.0
    %264 = vmatpush1.xpose.msra.mxu0 0.0
    %265 = vmatprep.subr.mxu0 0.0
    %266 = vmatpush1.xpose.msra.mxu0 0.0
    %267 = vmatprep.subr.mxu0 0.0
    %268 = vmatpush1.xpose.msra.mxu0 0.0
    %269 = vmatprep.subr.mxu0 0.0
    %270 = vmatpush1.xpose.msra.mxu0 0.0
    %271 = vmatprep.subr.mxu0 0.0
    %272 = vmatpush1.xpose.msra.mxu0 0.0
    %273 = vmatprep.subr.mxu0 0.0
    %274 = vmatpush1.xpose.msra.mxu0 0.0
    %275 = vmatprep.subr.mxu0 0.0
    %276 = vmatpush1.xpose.msra.mxu0 0.0
    %277 = vmatprep.subr.mxu0 0.0
    %278 = vmatpush1.xpose.msra.mxu0 0.0
    %279 = vmatprep.subr.mxu0 0.0
    %280 = vmatpush1.xpose.msra.mxu0 0.0
    %281 = vmatprep.subr.mxu0 0.0
    %282 = vmatpush1.xpose.msra.mxu0 0.0
    %283 = vmatprep.subr.mxu0 0.0
    %284 = vmatpush1.xpose.msra.mxu0 0.0
    %285 = vmatprep.subr.mxu0 0.0
    %286 = vmatpush1.xpose.msra.mxu0 0.0
    %287 = vmatprep.subr.mxu0 0.0
    %288 = vmatpush1.xpose.msra.mxu0 0.0
    %289 = vmatprep.subr.mxu0 0.0
    %290 = vmatpush1.xpose.msra.mxu0 0.0
    %291 = vmatprep.subr.mxu0 0.0
    %292 = vmatpush1.xpose.msra.mxu0 0.0
    %293 = vmatprep.subr.mxu0 0.0
    %294 = vmatpush1.xpose.msra.mxu0 0.0
    %295 = vmatprep.subr.mxu0 0.0
    %296 = vmatpush1.xpose.msra.mxu0 0.0
    %297 = vmatprep.subr.mxu0 0.0
    %298 = vmatpush1.xpose.msra.mxu0 0.0
    %299 = vmatprep.subr.mxu0 0.0
    %300 = vmatpush1.xpose.msra.mxu0 0.0
    %301 = vmatprep.mubr.f32.mxu0 0.0
    %302 = vmatmul.mubr.f32.gmra.mrb[0].mxu0 %v232
    %v303 = vpop.f32.mrb[0].mxu0
    %v304 = vadd.f32 0.0, %v303
    %v305 = vpop.f32.mrb[0].mxu0
    %306 = vdwg.mxu0
    %v307 = vmul.f32 %v304, 0.17677669
    %v308 = vsel %vm140, %v307, -inf
    %309 = vmax.xlane.f32.xlu0 %v308
    %v310 = vpop.xlane.xlu0 %309
    %v311 = vsub.f32 %v307, %v310
    %v312 = vmul.f32 %v311, 1.442695
    %v313 = vpow.pop %v312
    %v314 = vsel %vm140, %v313, 0.0
    %315 = vadd.xlane.f32.xlu0 %v314
    %v316 = vpop.xlane.xlu0 %315
    %v317 = vrcp.pop %v316
    %v318 = vmul.f32 %v313, %v317
    %v320 = vsel %vm140, %v318, 0
    %322 = vmatprep.subr.mxu0 0.0
    %323 = vmatpush1.msra.mxu0 %v230
    %324 = vmatprep.subr.mxu0 0.0
    %325 = vmatpush1.msra.mxu0 0.0
    %326 = vmatprep.subr.mxu0 0.0
    %327 = vmatpush1.msra.mxu0 0.0
    %328 = vmatprep.subr.mxu0 0.0
    %329 = vmatpush1.msra.mxu0 0.0
    %330 = vmatprep.subr.mxu0 0.0
    %331 = vmatpush1.msra.mxu0 0.0
    %332 = vmatprep.subr.mxu0 0.0
    %333 = vmatpush1.msra.mxu0 0.0
    %334 = vmatprep.subr.mxu0 0.0
    %335 = vmatpush1.msra.mxu0 0.0
    %336 = vmatprep.subr.mxu0 0.0
    %337 = vmatpush1.msra.mxu0 0.0
    %338 = vmatprep.subr.mxu0 0.0
    %339 = vmatpush1.msra.mxu0 0.0
    %340 = vmatprep.subr.mxu0 0.0
    %341 = vmatpush1.msra.mxu0 0.0
    %342 = vmatprep.subr.mxu0 0.0
    %343 = vmatpush1.msra.mxu0 0.0
    %344 = vmatprep.subr.mxu0 0.0
    %345 = vmatpush1.msra.mxu0 0.0
    %346 = vmatprep.subr.mxu0 0.0
    %347 = vmatpush1.msra.mxu0 0.0
    %348 = vmatprep.subr.mxu0 0.0
    %349 = vmatpush1.msra.mxu0 0.0
    %350 = vmatprep.subr.mxu0 0.0
    %351 = vmatpush1.msra.mxu0 0.0
    %352 = vmatprep.subr.mxu0 0.0
    %353 = vmatpush1.msra.mxu0 0.0
    %354 = vmatprep.subr.mxu0 0.0
    %355 = vmatpush1.msra.mxu0 0.0
    %356 = vmatprep.subr.mxu0 0.0
    %357 = vmatpush1.msra.mxu0 0.0
    %358 = vmatprep.subr.mxu0 0.0
    %359 = vmatpush1.msra.mxu0 0.0
    %360 = vmatprep.subr.mxu0 0.0
    %361 = vmatpush1.msra.mxu0 0.0
    %362 = vmatprep.subr.mxu0 0.0
    %363 = vmatpush1.msra.mxu0 0.0
    %364 = vmatprep.subr.mxu0 0.0
    %365 = vmatpush1.msra.mxu0 0.0
    %366 = vmatprep.subr.mxu0 0.0
    %367 = vmatpush1.msra.mxu0 0.0
    %368 = vmatprep.subr.mxu0 0.0
    %369 = vmatpush1.msra.mxu0 0.0
    %370 = vmatprep.subr.mxu0 0.0
    %371 = vmatpush1.msra.mxu0 0.0
    %372 = vmatprep.subr.mxu0 0.0
    %373 = vmatpush1.msra.mxu0 0.0
    %374 = vmatprep.subr.mxu0 0.0
    %375 = vmatpush1.msra.mxu0 0.0
    %376 = vmatprep.subr.mxu0 0.0
    %377 = vmatpush1.msra.mxu0 0.0
    %378 = vmatprep.subr.mxu0 0.0
    %379 = vmatpush1.msra.mxu0 0.0
    %380 = vmatprep.subr.mxu0 0.0
    %381 = vmatpush1.msra.mxu0 0.0
    %382 = vmatprep.subr.mxu0 0.0
    %383 = vmatpush1.msra.mxu0 0.0
    %384 = vmatprep.subr.mxu0 0.0
    %385 = vmatpush1.msra.mxu0 0.0
    %386 = vmatprep.mubr.f32.mxu0 0.0
    %387 = vmatmul.mubr.f32.gmra.mrb[0].mxu0 %v320
    %v388 = vpop.f32.mrb[0].mxu0
    %v389 = vadd.f32 0.0, %v388
    %v390 = vpop.f32.mrb[0].mxu0
    %391 = vdwg.mxu0
    %s392 = scalar_lea.vmem [#allocation2], 16
    %v393 = vld [vmem:[%s392] sm:$0xff]
    %s394 = scalar_lea.vmem [#allocation5], 16
    %v395 = vld [vmem:[%s394] sm:$0xff]
    %s396 = scalar_lea.vmem [#allocation7], 16
    %v397 = vld [vmem:[%s396] sm:$0xff]
    %v399 = vsel %vm62, %v393, 0
    %v402 = vsel %vm62, %v395, 0
    %404 = vmatprep.subr.mxu0 0.0
    %405 = vmatpush1.xpose.msra.mxu0 %v402
    %406 = vmatprep.subr.mxu0 0.0
    %407 = vmatpush1.xpose.msra.mxu0 0.0
    %408 = vmatprep.subr.mxu0 0.0
    %409 = vmatpush1.xpose.msra.mxu0 0.0
    %410 = vmatprep.subr.mxu0 0.0
    %411 = vmatpush1.xpose.msra.mxu0 0.0
    %412 = vmatprep.subr.mxu0 0.0
    %413 = vmatpush1.xpose.msra.mxu0 0.0
    %414 = vmatprep.subr.mxu0 0.0
    %415 = vmatpush1.xpose.msra.mxu0 0.0
    %416 = vmatprep.subr.mxu0 0.0
    %417 = vmatpush1.xpose.msra.mxu0 0.0
    %418 = vmatprep.subr.mxu0 0.0
    %419 = vmatpush1.xpose.msra.mxu0 0.0
    %420 = vmatprep.subr.mxu0 0.0
    %421 = vmatpush1.xpose.msra.mxu0 0.0
    %422 = vmatprep.subr.mxu0 0.0
    %423 = vmatpush1.xpose.msra.mxu0 0.0
    %424 = vmatprep.subr.mxu0 0.0
    %425 = vmatpush1.xpose.msra.mxu0 0.0
    %426 = vmatprep.subr.mxu0 0.0
    %427 = vmatpush1.xpose.msra.mxu0 0.0
    %428 = vmatprep.subr.mxu0 0.0
    %429 = vmatpush1.xpose.msra.mxu0 0.0
    %430 = vmatprep.subr.mxu0 0.0
    %431 = vmatpush1.xpose.msra.mxu0 0.0
    %432 = vmatprep.subr.mxu0 0.0
    %433 = vmatpush1.xpose.msra.mxu0 0.0
    %434 = vmatprep.subr.mxu0 0.0
    %435 = vmatpush1.xpose.msra.mxu0 0.0
    %436 = vmatprep.subr.mxu0 0.0
    %437 = vmatpush1.xpose.msra.mxu0 0.0
    %438 = vmatprep.subr.mxu0 0.0
    %439 = vmatpush1.xpose.msra.mxu0 0.0
    %440 = vmatprep.subr.mxu0 0.0
    %441 = vmatpush1.xpose.msra.mxu0 0.0
    %442 = vmatprep.subr.mxu0 0.0
    %443 = vmatpush1.xpose.msra.mxu0 0.0
    %444 = vmatprep.subr.mxu0 0.0
    %445 = vmatpush1.xpose.msra.mxu0 0.0
    %446 = vmatprep.subr.mxu0 0.0
    %447 = vmatpush1.xpose.msra.mxu0 0.0
    %448 = vmatprep.subr.mxu0 0.0
    %449 = vmatpush1.xpose.msra.mxu0 0.0
    %450 = vmatprep.subr.mxu0 0.0
    %451 = vmatpush1.xpose.msra.mxu0 0.0
    %452 = vmatprep.subr.mxu0 0.0
    %453 = vmatpush1.xpose.msra.mxu0 0.0
    %454 = vmatprep.subr.mxu0 0.0
    %455 = vmatpush1.xpose.msra.mxu0 0.0
    %456 = vmatprep.subr.mxu0 0.0
    %457 = vmatpush1.xpose.msra.mxu0 0.0
    %458 = vmatprep.subr.mxu0 0.0
    %459 = vmatpush1.xpose.msra.mxu0 0.0
    %460 = vmatprep.subr.mxu0 0.0
    %461 = vmatpush1.xpose.msra.mxu0 0.0
    %462 = vmatprep.subr.mxu0 0.0
    %463 = vmatpush1.xpose.msra.mxu0 0.0
    %464 = vmatprep.subr.mxu0 0.0
    %465 = vmatpush1.xpose.msra.mxu0 0.0
    %466 = vmatprep.subr.mxu0 0.0
    %467 = vmatpush1.xpose.msra.mxu0 0.0
    %468 = vmatprep.mubr.f32.mxu0 0.0
    %469 = vmatmul.mubr.f32.gmra.mrb[0].mxu0 %v399
    %v470 = vpop.f32.mrb[0].mxu0
    %v471 = vadd.f32 0.0, %v470
    %v472 = vpop.f32.mrb[0].mxu0
    %473 = vdwg.mxu0
    %v474 = vmul.f32 %v471, 0.17677669
    %v475 = vsel %vm140, %v474, -inf
    %476 = vmax.xlane.f32.xlu0 %v475
    %v477 = vpop.xlane.xlu0 %476
    %v478 = vsub.f32 %v474, %v477
    %v479 = vmul.f32 %v478, 1.442695
    %v480 = vpow.pop %v479
    %v481 = vsel %vm140, %v480, 0.0
    %482 = vadd.xlane.f32.xlu0 %v481
    %v483 = vpop.xlane.xlu0 %482
    %v484 = vrcp.pop %v483
    %v485 = vmul.f32 %v480, %v484
    %v487 = vsel %vm140, %v485, 0
    %489 = vmatprep.subr.mxu0 0.0
    %490 = vmatpush1.msra.mxu0 %v397
    %491 = vmatprep.subr.mxu0 0.0
    %492 = vmatpush1.msra.mxu0 0.0
    %493 = vmatprep.subr.mxu0 0.0
    %494 = vmatpush1.msra.mxu0 0.0
    %495 = vmatprep.subr.mxu0 0.0
    %496 = vmatpush1.msra.mxu0 0.0
    %497 = vmatprep.subr.mxu0 0.0
    %498 = vmatpush1.msra.mxu0 0.0
    %499 = vmatprep.subr.mxu0 0.0
    %500 = vmatpush1.msra.mxu0 0.0
    %501 = vmatprep.subr.mxu0 0.0
    %502 = vmatpush1.msra.mxu0 0.0
    %503 = vmatprep.subr.mxu0 0.0
    %504 = vmatpush1.msra.mxu0 0.0
    %505 = vmatprep.subr.mxu0 0.0
    %506 = vmatpush1.msra.mxu0 0.0
    %507 = vmatprep.subr.mxu0 0.0
    %508 = vmatpush1.msra.mxu0 0.0
    %509 = vmatprep.subr.mxu0 0.0
    %510 = vmatpush1.msra.mxu0 0.0
    %511 = vmatprep.subr.mxu0 0.0
    %512 = vmatpush1.msra.mxu0 0.0
    %513 = vmatprep.subr.mxu0 0.0
    %514 = vmatpush1.msra.mxu0 0.0
    %515 = vmatprep.subr.mxu0 0.0
    %516 = vmatpush1.msra.mxu0 0.0
    %517 = vmatprep.subr.mxu0 0.0
    %518 = vmatpush1.msra.mxu0 0.0
    %519 = vmatprep.subr.mxu0 0.0
    %520 = vmatpush1.msra.mxu0 0.0
    %521 = vmatprep.subr.mxu0 0.0
    %522 = vmatpush1.msra.mxu0 0.0
    %523 = vmatprep.subr.mxu0 0.0
    %524 = vmatpush1.msra.mxu0 0.0
    %525 = vmatprep.subr.mxu0 0.0
    %526 = vmatpush1.msra.mxu0 0.0
    %527 = vmatprep.subr.mxu0 0.0
    %528 = vmatpush1.msra.mxu0 0.0
    %529 = vmatprep.subr.mxu0 0.0
    %530 = vmatpush1.msra.mxu0 0.0
    %531 = vmatprep.subr.mxu0 0.0
    %532 = vmatpush1.msra.mxu0 0.0
    %533 = vmatprep.subr.mxu0 0.0
    %534 = vmatpush1.msra.mxu0 0.0
    %535 = vmatprep.subr.mxu0 0.0
    %536 = vmatpush1.msra.mxu0 0.0
    %537 = vmatprep.subr.mxu0 0.0
    %538 = vmatpush1.msra.mxu0 0.0
    %539 = vmatprep.subr.mxu0 0.0
    %540 = vmatpush1.msra.mxu0 0.0
    %541 = vmatprep.subr.mxu0 0.0
    %542 = vmatpush1.msra.mxu0 0.0
    %543 = vmatprep.subr.mxu0 0.0
    %544 = vmatpush1.msra.mxu0 0.0
    %545 = vmatprep.subr.mxu0 0.0
    %546 = vmatpush1.msra.mxu0 0.0
    %547 = vmatprep.subr.mxu0 0.0
    %548 = vmatpush1.msra.mxu0 0.0
    %549 = vmatprep.subr.mxu0 0.0
    %550 = vmatpush1.msra.mxu0 0.0
    %551 = vmatprep.subr.mxu0 0.0
    %552 = vmatpush1.msra.mxu0 0.0
    %553 = vmatprep.mubr.f32.mxu0 0.0
    %554 = vmatmul.mubr.f32.gmra.mrb[0].mxu0 %v487
    %v555 = vpop.f32.mrb[0].mxu0
    %v556 = vadd.f32 0.0, %v555
    %v557 = vpop.f32.mrb[0].mxu0
    %558 = vdwg.mxu0
    %s559 = scalar_lea.vmem [#allocation2], 24
    %v560 = vld [vmem:[%s559] sm:$0xff]
    %s561 = scalar_lea.vmem [#allocation5], 24
    %v562 = vld [vmem:[%s561] sm:$0xff]
    %s563 = scalar_lea.vmem [#allocation7], 24
    %v564 = vld [vmem:[%s563] sm:$0xff]
    %v566 = vsel %vm62, %v560, 0
    %v569 = vsel %vm62, %v562, 0
    %571 = vmatprep.subr.mxu0 0.0
    %572 = vmatpush1.xpose.msra.mxu0 %v569
    %573 = vmatprep.subr.mxu0 0.0
    %574 = vmatpush1.xpose.msra.mxu0 0.0
    %575 = vmatprep.subr.mxu0 0.0
    %576 = vmatpush1.xpose.msra.mxu0 0.0
    %577 = vmatprep.subr.mxu0 0.0
    %578 = vmatpush1.xpose.msra.mxu0 0.0
    %579 = vmatprep.subr.mxu0 0.0
    %580 = vmatpush1.xpose.msra.mxu0 0.0
    %581 = vmatprep.subr.mxu0 0.0
    %582 = vmatpush1.xpose.msra.mxu0 0.0
    %583 = vmatprep.subr.mxu0 0.0
    %584 = vmatpush1.xpose.msra.mxu0 0.0
    %585 = vmatprep.subr.mxu0 0.0
    %586 = vmatpush1.xpose.msra.mxu0 0.0
    %587 = vmatprep.subr.mxu0 0.0
    %588 = vmatpush1.xpose.msra.mxu0 0.0
    %589 = vmatprep.subr.mxu0 0.0
    %590 = vmatpush1.xpose.msra.mxu0 0.0
    %591 = vmatprep.subr.mxu0 0.0
    %592 = vmatpush1.xpose.msra.mxu0 0.0
    %593 = vmatprep.subr.mxu0 0.0
    %594 = vmatpush1.xpose.msra.mxu0 0.0
    %595 = vmatprep.subr.mxu0 0.0
    %596 = vmatpush1.xpose.msra.mxu0 0.0
    %597 = vmatprep.subr.mxu0 0.0
    %598 = vmatpush1.xpose.msra.mxu0 0.0
    %599 = vmatprep.subr.mxu0 0.0
    %600 = vmatpush1.xpose.msra.mxu0 0.0
    %601 = vmatprep.subr.mxu0 0.0
    %602 = vmatpush1.xpose.msra.mxu0 0.0
    %603 = vmatprep.subr.mxu0 0.0
    %604 = vmatpush1.xpose.msra.mxu0 0.0
    %605 = vmatprep.subr.mxu0 0.0
    %606 = vmatpush1.xpose.msra.mxu0 0.0
    %607 = vmatprep.subr.mxu0 0.0
    %608 = vmatpush1.xpose.msra.mxu0 0.0
    %609 = vmatprep.subr.mxu0 0.0
    %610 = vmatpush1.xpose.msra.mxu0 0.0
    %611 = vmatprep.subr.mxu0 0.0
    %612 = vmatpush1.xpose.msra.mxu0 0.0
    %613 = vmatprep.subr.mxu0 0.0
    %614 = vmatpush1.xpose.msra.mxu0 0.0
    %615 = vmatprep.subr.mxu0 0.0
    %616 = vmatpush1.xpose.msra.mxu0 0.0
    %617 = vmatprep.subr.mxu0 0.0
    %618 = vmatpush1.xpose.msra.mxu0 0.0
    %619 = vmatprep.subr.mxu0 0.0
    %620 = vmatpush1.xpose.msra.mxu0 0.0
    %621 = vmatprep.subr.mxu0 0.0
    %622 = vmatpush1.xpose.msra.mxu0 0.0
    %623 = vmatprep.subr.mxu0 0.0
    %624 = vmatpush1.xpose.msra.mxu0 0.0
    %625 = vmatprep.subr.mxu0 0.0
    %626 = vmatpush1.xpose.msra.mxu0 0.0
    %627 = vmatprep.subr.mxu0 0.0
    %628 = vmatpush1.xpose.msra.mxu0 0.0
    %629 = vmatprep.subr.mxu0 0.0
    %630 = vmatpush1.xpose.msra.mxu0 0.0
    %631 = vmatprep.subr.mxu0 0.0
    %632 = vmatpush1.xpose.msra.mxu0 0.0
    %633 = vmatprep.subr.mxu0 0.0
    %634 = vmatpush1.xpose.msra.mxu0 0.0
    %635 = vmatprep.mubr.f32.mxu0 0.0
    %636 = vmatmul.mubr.f32.gmra.mrb[0].mxu0 %v566
    %v637 = vpop.f32.mrb[0].mxu0
    %v638 = vadd.f32 0.0, %v637
    %v639 = vpop.f32.mrb[0].mxu0
    %640 = vdwg.mxu0
    %v641 = vmul.f32 %v638, 0.17677669
    %v642 = vsel %vm140, %v641, -inf
    %643 = vmax.xlane.f32.xlu0 %v642
    %v644 = vpop.xlane.xlu0 %643
    %v645 = vsub.f32 %v641, %v644
    %v646 = vmul.f32 %v645, 1.442695
    %v647 = vpow.pop %v646
    %v648 = vsel %vm140, %v647, 0.0
    %649 = vadd.xlane.f32.xlu0 %v648
    %v650 = vpop.xlane.xlu0 %649
    %v651 = vrcp.pop %v650
    %v652 = vmul.f32 %v647, %v651
    %v654 = vsel %vm140, %v652, 0
    %656 = vmatprep.subr.mxu0 0.0
    %657 = vmatpush1.msra.mxu0 %v564
    %658 = vmatprep.subr.mxu0 0.0
    %659 = vmatpush1.msra.mxu0 0.0
    %660 = vmatprep.subr.mxu0 0.0
    %661 = vmatpush1.msra.mxu0 0.0
    %662 = vmatprep.subr.mxu0 0.0
    %663 = vmatpush1.msra.mxu0 0.0
    %664 = vmatprep.subr.mxu0 0.0
    %665 = vmatpush1.msra.mxu0 0.0
    %666 = vmatprep.subr.mxu0 0.0
    %667 = vmatpush1.msra.mxu0 0.0
    %668 = vmatprep.subr.mxu0 0.0
    %669 = vmatpush1.msra.mxu0 0.0
    %670 = vmatprep.subr.mxu0 0.0
    %671 = vmatpush1.msra.mxu0 0.0
    %672 = vmatprep.subr.mxu0 0.0
    %673 = vmatpush1.msra.mxu0 0.0
    %674 = vmatprep.subr.mxu0 0.0
    %675 = vmatpush1.msra.mxu0 0.0
    %676 = vmatprep.subr.mxu0 0.0
    %677 = vmatpush1.msra.mxu0 0.0
    %678 = vmatprep.subr.mxu0 0.0
    %679 = vmatpush1.msra.mxu0 0.0
    %680 = vmatprep.subr.mxu0 0.0
    %681 = vmatpush1.msra.mxu0 0.0
    %682 = vmatprep.subr.mxu0 0.0
    %683 = vmatpush1.msra.mxu0 0.0
    %684 = vmatprep.subr.mxu0 0.0
    %685 = vmatpush1.msra.mxu0 0.0
    %686 = vmatprep.subr.mxu0 0.0
    %687 = vmatpush1.msra.mxu0 0.0
    %688 = vmatprep.subr.mxu0 0.0
    %689 = vmatpush1.msra.mxu0 0.0
    %690 = vmatprep.subr.mxu0 0.0
    %691 = vmatpush1.msra.mxu0 0.0
    %692 = vmatprep.subr.mxu0 0.0
    %693 = vmatpush1.msra.mxu0 0.0
    %694 = vmatprep.subr.mxu0 0.0
    %695 = vmatpush1.msra.mxu0 0.0
    %696 = vmatprep.subr.mxu0 0.0
    %697 = vmatpush1.msra.mxu0 0.0
    %698 = vmatprep.subr.mxu0 0.0
    %699 = vmatpush1.msra.mxu0 0.0
    %700 = vmatprep.subr.mxu0 0.0
    %701 = vmatpush1.msra.mxu0 0.0
    %702 = vmatprep.subr.mxu0 0.0
    %703 = vmatpush1.msra.mxu0 0.0
    %704 = vmatprep.subr.mxu0 0.0
    %705 = vmatpush1.msra.mxu0 0.0
    %706 = vmatprep.subr.mxu0 0.0
    %707 = vmatpush1.msra.mxu0 0.0
    %708 = vmatprep.subr.mxu0 0.0
    %709 = vmatpush1.msra.mxu0 0.0
    %710 = vmatprep.subr.mxu0 0.0
    %711 = vmatpush1.msra.mxu0 0.0
    %712 = vmatprep.subr.mxu0 0.0
    %713 = vmatpush1.msra.mxu0 0.0
    %714 = vmatprep.subr.mxu0 0.0
    %715 = vmatpush1.msra.mxu0 0.0
    %716 = vmatprep.subr.mxu0 0.0
    %717 = vmatpush1.msra.mxu0 0.0
    %718 = vmatprep.subr.mxu0 0.0
    %719 = vmatpush1.msra.mxu0 0.0
    %720 = vmatprep.mubr.f32.mxu0 0.0
    %721 = vmatmul.mubr.f32.gmra.mrb[0].mxu0 %v654
    %v722 = vpop.f32.mrb[0].mxu0
    %v723 = vadd.f32 0.0, %v722
    %v724 = vpop.f32.mrb[0].mxu0
    %725 = vdwg.mxu0
    %s726 = scalar_lea.vmem [#allocation2], 32
    %v727 = vld [vmem:[%s726] sm:$0xff]
    %s728 = scalar_lea.vmem [#allocation5], 32
    %v729 = vld [vmem:[%s728] sm:$0xff]
    %s730 = scalar_lea.vmem [#allocation7], 32
    %v731 = vld [vmem:[%s730] sm:$0xff]
    %v733 = vsel %vm62, %v727, 0
    %v736 = vsel %vm62, %v729, 0
    %738 = vmatprep.subr.mxu0 0.0
    %739 = vmatpush1.xpose.msra.mxu0 %v736
    %740 = vmatprep.subr.mxu0 0.0
    %741 = vmatpush1.xpose.msra.mxu0 0.0
    %742 = vmatprep.subr.mxu0 0.0
    %743 = vmatpush1.xpose.msra.mxu0 0.0
    %744 = vmatprep.subr.mxu0 0.0
    %745 = vmatpush1.xpose.msra.mxu0 0.0
    %746 = vmatprep.subr.mxu0 0.0
    %747 = vmatpush1.xpose.msra.mxu0 0.0
    %748 = vmatprep.subr.mxu0 0.0
    %749 = vmatpush1.xpose.msra.mxu0 0.0
    %750 = vmatprep.subr.mxu0 0.0
    %751 = vmatpush1.xpose.msra.mxu0 0.0
    %752 = vmatprep.subr.mxu0 0.0
    %753 = vmatpush1.xpose.msra.mxu0 0.0
    %754 = vmatprep.subr.mxu0 0.0
    %755 = vmatpush1.xpose.msra.mxu0 0.0
    %756 = vmatprep.subr.mxu0 0.0
    %757 = vmatpush1.xpose.msra.mxu0 0.0
    %758 = vmatprep.subr.mxu0 0.0
    %759 = vmatpush1.xpose.msra.mxu0 0.0
    %760 = vmatprep.subr.mxu0 0.0
    %761 = vmatpush1.xpose.msra.mxu0 0.0
    %762 = vmatprep.subr.mxu0 0.0
    %763 = vmatpush1.xpose.msra.mxu0 0.0
    %764 = vmatprep.subr.mxu0 0.0
    %765 = vmatpush1.xpose.msra.mxu0 0.0
    %766 = vmatprep.subr.mxu0 0.0
    %767 = vmatpush1.xpose.msra.mxu0 0.0
    %768 = vmatprep.subr.mxu0 0.0
    %769 = vmatpush1.xpose.msra.mxu0 0.0
    %770 = vmatprep.subr.mxu0 0.0
    %771 = vmatpush1.xpose.msra.mxu0 0.0
    %772 = vmatprep.subr.mxu0 0.0
    %773 = vmatpush1.xpose.msra.mxu0 0.0
    %774 = vmatprep.subr.mxu0 0.0
    %775 = vmatpush1.xpose.msra.mxu0 0.0
    %776 = vmatprep.subr.mxu0 0.0
    %777 = vmatpush1.xpose.msra.mxu0 0.0
    %778 = vmatprep.subr.mxu0 0.0
    %779 = vmatpush1.xpose.msra.mxu0 0.0
    %780 = vmatprep.subr.mxu0 0.0
    %781 = vmatpush1.xpose.msra.mxu0 0.0
    %782 = vmatprep.subr.mxu0 0.0
    %783 = vmatpush1.xpose.msra.mxu0 0.0
    %784 = vmatprep.subr.mxu0 0.0
    %785 = vmatpush1.xpose.msra.mxu0 0.0
    %786 = vmatprep.subr.mxu0 0.0
    %787 = vmatpush1.xpose.msra.mxu0 0.0
    %788 = vmatprep.subr.mxu0 0.0
    %789 = vmatpush1.xpose.msra.mxu0 0.0
    %790 = vmatprep.subr.mxu0 0.0
    %791 = vmatpush1.xpose.msra.mxu0 0.0
    %792 = vmatprep.subr.mxu0 0.0
    %793 = vmatpush1.xpose.msra.mxu0 0.0
    %794 = vmatprep.subr.mxu0 0.0
    %795 = vmatpush1.xpose.msra.mxu0 0.0
    %796 = vmatprep.subr.mxu0 0.0
    %797 = vmatpush1.xpose.msra.mxu0 0.0
    %798 = vmatprep.subr.mxu0 0.0
    %799 = vmatpush1.xpose.msra.mxu0 0.0
    %800 = vmatprep.subr.mxu0 0.0
    %801 = vmatpush1.xpose.msra.mxu0 0.0
    %802 = vmatprep.mubr.f32.mxu0 0.0
    %803 = vmatmul.mubr.f32.gmra.mrb[0].mxu0 %v733
    %v804 = vpop.f32.mrb[0].mxu0
    %v805 = vadd.f32 0.0, %v804
    %v806 = vpop.f32.mrb[0].mxu0
    %807 = vdwg.mxu0
    %v808 = vmul.f32 %v805, 0.17677669
    %v809 = vsel %vm140, %v808, -inf
    %810 = vmax.xlane.f32.xlu0 %v809
    %v811 = vpop.xlane.xlu0 %810
    %v812 = vsub.f32 %v808, %v811
    %v813 = vmul.f32 %v812, 1.442695
    %v814 = vpow.pop %v813
    %v815 = vsel %vm140, %v814, 0.0
    %816 = vadd.xlane.f32.xlu0 %v815
    %v817 = vpop.xlane.xlu0 %816
    %v818 = vrcp.pop %v817
    %v819 = vmul.f32 %v814, %v818
    %v821 = vsel %vm140, %v819, 0
    %823 = vmatprep.subr.mxu0 0.0
    %824 = vmatpush1.msra.mxu0 %v731
    %825 = vmatprep.subr.mxu0 0.0
    %826 = vmatpush1.msra.mxu0 0.0
    %827 = vmatprep.subr.mxu0 0.0
    %828 = vmatpush1.msra.mxu0 0.0
    %829 = vmatprep.subr.mxu0 0.0
    %830 = vmatpush1.msra.mxu0 0.0
    %831 = vmatprep.subr.mxu0 0.0
    %832 = vmatpush1.msra.mxu0 0.0
    %833 = vmatprep.subr.mxu0 0.0
    %834 = vmatpush1.msra.mxu0 0.0
    %835 = vmatprep.subr.mxu0 0.0
    %836 = vmatpush1.msra.mxu0 0.0
    %837 = vmatprep.subr.mxu0 0.0
    %838 = vmatpush1.msra.mxu0 0.0
    %839 = vmatprep.subr.mxu0 0.0
    %840 = vmatpush1.msra.mxu0 0.0
    %841 = vmatprep.subr.mxu0 0.0
    %842 = vmatpush1.msra.mxu0 0.0
    %843 = vmatprep.subr.mxu0 0.0
    %844 = vmatpush1.msra.mxu0 0.0
    %845 = vmatprep.subr.mxu0 0.0
    %846 = vmatpush1.msra.mxu0 0.0
    %847 = vmatprep.subr.mxu0 0.0
    %848 = vmatpush1.msra.mxu0 0.0
    %849 = vmatprep.subr.mxu0 0.0
    %850 = vmatpush1.msra.mxu0 0.0
    %851 = vmatprep.subr.mxu0 0.0
    %852 = vmatpush1.msra.mxu0 0.0
    %853 = vmatprep.subr.mxu0 0.0
    %854 = vmatpush1.msra.mxu0 0.0
    %855 = vmatprep.subr.mxu0 0.0
    %856 = vmatpush1.msra.mxu0 0.0
    %857 = vmatprep.subr.mxu0 0.0
    %858 = vmatpush1.msra.mxu0 0.0
    %859 = vmatprep.subr.mxu0 0.0
    %860 = vmatpush1.msra.mxu0 0.0
    %861 = vmatprep.subr.mxu0 0.0
    %862 = vmatpush1.msra.mxu0 0.0
    %863 = vmatprep.subr.mxu0 0.0
    %864 = vmatpush1.msra.mxu0 0.0
    %865 = vmatprep.subr.mxu0 0.0
    %866 = vmatpush1.msra.mxu0 0.0
    %867 = vmatprep.subr.mxu0 0.0
    %868 = vmatpush1.msra.mxu0 0.0
    %869 = vmatprep.subr.mxu0 0.0
    %870 = vmatpush1.msra.mxu0 0.0
    %871 = vmatprep.subr.mxu0 0.0
    %872 = vmatpush1.msra.mxu0 0.0
    %873 = vmatprep.subr.mxu0 0.0
    %874 = vmatpush1.msra.mxu0 0.0
    %875 = vmatprep.subr.mxu0 0.0
    %876 = vmatpush1.msra.mxu0 0.0
    %877 = vmatprep.subr.mxu0 0.0
    %878 = vmatpush1.msra.mxu0 0.0
    %879 = vmatprep.subr.mxu0 0.0
    %880 = vmatpush1.msra.mxu0 0.0
    %881 = vmatprep.subr.mxu0 0.0
    %882 = vmatpush1.msra.mxu0 0.0
    %883 = vmatprep.subr.mxu0 0.0
    %884 = vmatpush1.msra.mxu0 0.0
    %885 = vmatprep.subr.mxu0 0.0
    %886 = vmatpush1.msra.mxu0 0.0
    %887 = vmatprep.mubr.f32.mxu0 0.0
    %888 = vmatmul.mubr.f32.gmra.mrb[0].mxu0 %v821
    %v889 = vpop.f32.mrb[0].mxu0
    %v890 = vadd.f32 0.0, %v889
    %v891 = vpop.f32.mrb[0].mxu0
    %892 = vdwg.mxu0
    %s893 = scalar_lea.vmem [#allocation2], 40
    %v894 = vld [vmem:[%s893] sm:$0xff]
    %s895 = scalar_lea.vmem [#allocation5], 40
    %v896 = vld [vmem:[%s895] sm:$0xff]
    %s897 = scalar_lea.vmem [#allocation7], 40
    %v898 = vld [vmem:[%s897] sm:$0xff]
    %v900 = vsel %vm62, %v894, 0
    %v903 = vsel %vm62, %v896, 0
    %905 = vmatprep.subr.mxu0 0.0
    %906 = vmatpush1.xpose.msra.mxu0 %v903
    %907 = vmatprep.subr.mxu0 0.0
    %908 = vmatpush1.xpose.msra.mxu0 0.0
    %909 = vmatprep.subr.mxu0 0.0
    %910 = vmatpush1.xpose.msra.mxu0 0.0
    %911 = vmatprep.subr.mxu0 0.0
    %912 = vmatpush1.xpose.msra.mxu0 0.0
    %913 = vmatprep.subr.mxu0 0.0
    %914 = vmatpush1.xpose.msra.mxu0 0.0
    %915 = vmatprep.subr.mxu0 0.0
    %916 = vmatpush1.xpose.msra.mxu0 0.0
    %917 = vmatprep.subr.mxu0 0.0
    %918 = vmatpush1.xpose.msra.mxu0 0.0
    %919 = vmatprep.subr.mxu0 0.0
    %920 = vmatpush1.xpose.msra.mxu0 0.0
    %921 = vmatprep.subr.mxu0 0.0
    %922 = vmatpush1.xpose.msra.mxu0 0.0
    %923 = vmatprep.subr.mxu0 0.0
    %924 = vmatpush1.xpose.msra.mxu0 0.0
    %925 = vmatprep.subr.mxu0 0.0
    %926 = vmatpush1.xpose.msra.mxu0 0.0
    %927 = vmatprep.subr.mxu0 0.0
    %928 = vmatpush1.xpose.msra.mxu0 0.0
    %929 = vmatprep.subr.mxu0 0.0
    %930 = vmatpush1.xpose.msra.mxu0 0.0
    %931 = vmatprep.subr.mxu0 0.0
    %932 = vmatpush1.xpose.msra.mxu0 0.0
    %933 = vmatprep.subr.mxu0 0.0
    %934 = vmatpush1.xpose.msra.mxu0 0.0
    %935 = vmatprep.subr.mxu0 0.0
    %936 = vmatpush1.xpose.msra.mxu0 0.0
    %937 = vmatprep.subr.mxu0 0.0
    %938 = vmatpush1.xpose.msra.mxu0 0.0
    %939 = vmatprep.subr.mxu0 0.0
    %940 = vmatpush1.xpose.msra.mxu0 0.0
    %941 = vmatprep.subr.mxu0 0.0
    %942 = vmatpush1.xpose.msra.mxu0 0.0
    %943 = vmatprep.subr.mxu0 0.0
    %944 = vmatpush1.xpose.msra.mxu0 0.0
    %945 = vmatprep.subr.mxu0 0.0
    %946 = vmatpush1.xpose.msra.mxu0 0.0
    %947 = vmatprep.subr.mxu0 0.0
    %948 = vmatpush1.xpose.msra.mxu0 0.0
    %949 = vmatprep.subr.mxu0 0.0
    %950 = vmatpush1.xpose.msra.mxu0 0.0
    %951 = vmatprep.subr.mxu0 0.0
    %952 = vmatpush1.xpose.msra.mxu0 0.0
    %953 = vmatprep.subr.mxu0 0.0
    %954 = vmatpush1.xpose.msra.mxu0 0.0
    %955 = vmatprep.subr.mxu0 0.0
    %956 = vmatpush1.xpose.msra.mxu0 0.0
    %957 = vmatprep.subr.mxu0 0.0
    %958 = vmatpush1.xpose.msra.mxu0 0.0
    %959 = vmatprep.subr.mxu0 0.0
    %960 = vmatpush1.xpose.msra.mxu0 0.0
    %961 = vmatprep.subr.mxu0 0.0
    %962 = vmatpush1.xpose.msra.mxu0 0.0
    %963 = vmatprep.subr.mxu0 0.0
    %964 = vmatpush1.xpose.msra.mxu0 0.0
    %965 = vmatprep.subr.mxu0 0.0
    %966 = vmatpush1.xpose.msra.mxu0 0.0
    %967 = vmatprep.subr.mxu0 0.0
    %968 = vmatpush1.xpose.msra.mxu0 0.0
    %969 = vmatprep.mubr.f32.mxu0 0.0
    %970 = vmatmul.mubr.f32.gmra.mrb[0].mxu0 %v900
    %v971 = vpop.f32.mrb[0].mxu0
    %v972 = vadd.f32 0.0, %v971
    %v973 = vpop.f32.mrb[0].mxu0
    %974 = vdwg.mxu0
    %v975 = vmul.f32 %v972, 0.17677669
    %v976 = vsel %vm140, %v975, -inf
    %977 = vmax.xlane.f32.xlu0 %v976
    %v978 = vpop.xlane.xlu0 %977
    %v979 = vsub.f32 %v975, %v978
    %v980 = vmul.f32 %v979, 1.442695
    %v981 = vpow.pop %v980
    %v982 = vsel %vm140, %v981, 0.0
    %983 = vadd.xlane.f32.xlu0 %v982
    %v984 = vpop.xlane.xlu0 %983
    %v985 = vrcp.pop %v984
    %v986 = vmul.f32 %v981, %v985
    %v988 = vsel %vm140, %v986, 0
    %990 = vmatprep.subr.mxu0 0.0
    %991 = vmatpush1.msra.mxu0 %v898
    %992 = vmatprep.subr.mxu0 0.0
    %993 = vmatpush1.msra.mxu0 0.0
    %994 = vmatprep.subr.mxu0 0.0
    %995 = vmatpush1.msra.mxu0 0.0
    %996 = vmatprep.subr.mxu0 0.0
    %997 = vmatpush1.msra.mxu0 0.0
    %998 = vmatprep.subr.mxu0 0.0
    %999 = vmatpush1.msra.mxu0 0.0
    %1000 = vmatprep.subr.mxu0 0.0
    %1001 = vmatpush1.msra.mxu0 0.0
    %1002 = vmatprep.subr.mxu0 0.0
    %1003 = vmatpush1.msra.mxu0 0.0
    %1004 = vmatprep.subr.mxu0 0.0
    %1005 = vmatpush1.msra.mxu0 0.0
    %1006 = vmatprep.subr.mxu0 0.0
    %1007 = vmatpush1.msra.mxu0 0.0
    %1008 = vmatprep.subr.mxu0 0.0
    %1009 = vmatpush1.msra.mxu0 0.0
    %1010 = vmatprep.subr.mxu0 0.0
    %1011 = vmatpush1.msra.mxu0 0.0
    %1012 = vmatprep.subr.mxu0 0.0
    %1013 = vmatpush1.msra.mxu0 0.0
    %1014 = vmatprep.subr.mxu0 0.0
    %1015 = vmatpush1.msra.mxu0 0.0
    %1016 = vmatprep.subr.mxu0 0.0
    %1017 = vmatpush1.msra.mxu0 0.0
    %1018 = vmatprep.subr.mxu0 0.0
    %1019 = vmatpush1.msra.mxu0 0.0
    %1020 = vmatprep.subr.mxu0 0.0
    %1021 = vmatpush1.msra.mxu0 0.0
    %1022 = vmatprep.subr.mxu0 0.0
    %1023 = vmatpush1.msra.mxu0 0.0
    %1024 = vmatprep.subr.mxu0 0.0
    %1025 = vmatpush1.msra.mxu0 0.0
    %1026 = vmatprep.subr.mxu0 0.0
    %1027 = vmatpush1.msra.mxu0 0.0
    %1028 = vmatprep.subr.mxu0 0.0
    %1029 = vmatpush1.msra.mxu0 0.0
    %1030 = vmatprep.subr.mxu0 0.0
    %1031 = vmatpush1.msra.mxu0 0.0
    %1032 = vmatprep.subr.mxu0 0.0
    %1033 = vmatpush1.msra.mxu0 0.0
    %1034 = vmatprep.subr.mxu0 0.0
    %1035 = vmatpush1.msra.mxu0 0.0
    %1036 = vmatprep.subr.mxu0 0.0
    %1037 = vmatpush1.msra.mxu0 0.0
    %1038 = vmatprep.subr.mxu0 0.0
    %1039 = vmatpush1.msra.mxu0 0.0
    %1040 = vmatprep.subr.mxu0 0.0
    %1041 = vmatpush1.msra.mxu0 0.0
    %1042 = vmatprep.subr.mxu0 0.0
    %1043 = vmatpush1.msra.mxu0 0.0
    %1044 = vmatprep.subr.mxu0 0.0
    %1045 = vmatpush1.msra.mxu0 0.0
    %1046 = vmatprep.subr.mxu0 0.0
    %1047 = vmatpush1.msra.mxu0 0.0
    %1048 = vmatprep.subr.mxu0 0.0
    %1049 = vmatpush1.msra.mxu0 0.0
    %1050 = vmatprep.subr.mxu0 0.0
    %1051 = vmatpush1.msra.mxu0 0.0
    %1052 = vmatprep.subr.mxu0 0.0
    %1053 = vmatpush1.msra.mxu0 0.0
    %1054 = vmatprep.mubr.f32.mxu0 0.0
    %1055 = vmatmul.mubr.f32.gmra.mrb[0].mxu0 %v988
    %v1056 = vpop.f32.mrb[0].mxu0
    %v1057 = vadd.f32 0.0, %v1056
    %v1058 = vpop.f32.mrb[0].mxu0
    %1059 = vdwg.mxu0
    %s1060 = scalar_lea.vmem [#allocation2], 48
    %v1061 = vld [vmem:[%s1060] sm:$0xff]
    %s1062 = scalar_lea.vmem [#allocation5], 48
    %v1063 = vld [vmem:[%s1062] sm:$0xff]
    %s1064 = scalar_lea.vmem [#allocation7], 48
    %v1065 = vld [vmem:[%s1064] sm:$0xff]
    %v1067 = vsel %vm62, %v1061, 0
    %v1070 = vsel %vm62, %v1063, 0
    %1072 = vmatprep.subr.mxu0 0.0
    %1073 = vmatpush1.xpose.msra.mxu0 %v1070
    %1074 = vmatprep.subr.mxu0 0.0
    %1075 = vmatpush1.xpose.msra.mxu0 0.0
    %1076 = vmatprep.subr.mxu0 0.0
    %1077 = vmatpush1.xpose.msra.mxu0 0.0
    %1078 = vmatprep.subr.mxu0 0.0
    %1079 = vmatpush1.xpose.msra.mxu0 0.0
    %1080 = vmatprep.subr.mxu0 0.0
    %1081 = vmatpush1.xpose.msra.mxu0 0.0
    %1082 = vmatprep.subr.mxu0 0.0
    %1083 = vmatpush1.xpose.msra.mxu0 0.0
    %1084 = vmatprep.subr.mxu0 0.0
    %1085 = vmatpush1.xpose.msra.mxu0 0.0
    %1086 = vmatprep.subr.mxu0 0.0
    %1087 = vmatpush1.xpose.msra.mxu0 0.0
    %1088 = vmatprep.subr.mxu0 0.0
    %1089 = vmatpush1.xpose.msra.mxu0 0.0
    %1090 = vmatprep.subr.mxu0 0.0
    %1091 = vmatpush1.xpose.msra.mxu0 0.0
    %1092 = vmatprep.subr.mxu0 0.0
    %1093 = vmatpush1.xpose.msra.mxu0 0.0
    %1094 = vmatprep.subr.mxu0 0.0
    %1095 = vmatpush1.xpose.msra.mxu0 0.0
    %1096 = vmatprep.subr.mxu0 0.0
    %1097 = vmatpush1.xpose.msra.mxu0 0.0
    %1098 = vmatprep.subr.mxu0 0.0
    %1099 = vmatpush1.xpose.msra.mxu0 0.0
    %1100 = vmatprep.subr.mxu0 0.0
    %1101 = vmatpush1.xpose.msra.mxu0 0.0
    %1102 = vmatprep.subr.mxu0 0.0
    %1103 = vmatpush1.xpose.msra.mxu0 0.0
    %1104 = vmatprep.subr.mxu0 0.0
    %1105 = vmatpush1.xpose.msra.mxu0 0.0
    %1106 = vmatprep.subr.mxu0 0.0
    %1107 = vmatpush1.xpose.msra.mxu0 0.0
    %1108 = vmatprep.subr.mxu0 0.0
    %1109 = vmatpush1.xpose.msra.mxu0 0.0
    %1110 = vmatprep.subr.mxu0 0.0
    %1111 = vmatpush1.xpose.msra.mxu0 0.0
    %1112 = vmatprep.subr.mxu0 0.0
    %1113 = vmatpush1.xpose.msra.mxu0 0.0
    %1114 = vmatprep.subr.mxu0 0.0
    %1115 = vmatpush1.xpose.msra.mxu0 0.0
    %1116 = vmatprep.subr.mxu0 0.0
    %1117 = vmatpush1.xpose.msra.mxu0 0.0
    %1118 = vmatprep.subr.mxu0 0.0
    %1119 = vmatpush1.xpose.msra.mxu0 0.0
    %1120 = vmatprep.subr.mxu0 0.0
    %1121 = vmatpush1.xpose.msra.mxu0 0.0
    %1122 = vmatprep.subr.mxu0 0.0
    %1123 = vmatpush1.xpose.msra.mxu0 0.0
    %1124 = vmatprep.subr.mxu0 0.0
    %1125 = vmatpush1.xpose.msra.mxu0 0.0
    %1126 = vmatprep.subr.mxu0 0.0
    %1127 = vmatpush1.xpose.msra.mxu0 0.0
    %1128 = vmatprep.subr.mxu0 0.0
    %1129 = vmatpush1.xpose.msra.mxu0 0.0
    %1130 = vmatprep.subr.mxu0 0.0
    %1131 = vmatpush1.xpose.msra.mxu0 0.0
    %1132 = vmatprep.subr.mxu0 0.0
    %1133 = vmatpush1.xpose.msra.mxu0 0.0
    %1134 = vmatprep.subr.mxu0 0.0
    %1135 = vmatpush1.xpose.msra.mxu0 0.0
    %1136 = vmatprep.mubr.f32.mxu0 0.0
    %1137 = vmatmul.mubr.f32.gmra.mrb[0].mxu0 %v1067
    %v1138 = vpop.f32.mrb[0].mxu0
    %v1139 = vadd.f32 0.0, %v1138
    %v1140 = vpop.f32.mrb[0].mxu0
    %1141 = vdwg.mxu0
    %v1142 = vmul.f32 %v1139, 0.17677669
    %v1143 = vsel %vm140, %v1142, -inf
    %1144 = vmax.xlane.f32.xlu0 %v1143
    %v1145 = vpop.xlane.xlu0 %1144
    %v1146 = vsub.f32 %v1142, %v1145
    %v1147 = vmul.f32 %v1146, 1.442695
    %v1148 = vpow.pop %v1147
    %v1149 = vsel %vm140, %v1148, 0.0
    %1150 = vadd.xlane.f32.xlu0 %v1149
    %v1151 = vpop.xlane.xlu0 %1150
    %v1152 = vrcp.pop %v1151
    %v1153 = vmul.f32 %v1148, %v1152
    %v1155 = vsel %vm140, %v1153, 0
    %1157 = vmatprep.subr.mxu0 0.0
    %1158 = vmatpush1.msra.mxu0 %v1065
    %1159 = vmatprep.subr.mxu0 0.0
    %1160 = vmatpush1.msra.mxu0 0.0
    %1161 = vmatprep.subr.mxu0 0.0
    %1162 = vmatpush1.msra.mxu0 0.0
    %1163 = vmatprep.subr.mxu0 0.0
    %1164 = vmatpush1.msra.mxu0 0.0
    %1165 = vmatprep.subr.mxu0 0.0
    %1166 = vmatpush1.msra.mxu0 0.0
    %1167 = vmatprep.subr.mxu0 0.0
    %1168 = vmatpush1.msra.mxu0 0.0
    %1169 = vmatprep.subr.mxu0 0.0
    %1170 = vmatpush1.msra.mxu0 0.0
    %1171 = vmatprep.subr.mxu0 0.0
    %1172 = vmatpush1.msra.mxu0 0.0
    %1173 = vmatprep.subr.mxu0 0.0
    %1174 = vmatpush1.msra.mxu0 0.0
    %1175 = vmatprep.subr.mxu0 0.0
    %1176 = vmatpush1.msra.mxu0 0.0
    %1177 = vmatprep.subr.mxu0 0.0
    %1178 = vmatpush1.msra.mxu0 0.0
    %1179 = vmatprep.subr.mxu0 0.0
    %1180 = vmatpush1.msra.mxu0 0.0
    %1181 = vmatprep.subr.mxu0 0.0
    %1182 = vmatpush1.msra.mxu0 0.0
    %1183 = vmatprep.subr.mxu0 0.0
    %1184 = vmatpush1.msra.mxu0 0.0
    %1185 = vmatprep.subr.mxu0 0.0
    %1186 = vmatpush1.msra.mxu0 0.0
    %1187 = vmatprep.subr.mxu0 0.0
    %1188 = vmatpush1.msra.mxu0 0.0
    %1189 = vmatprep.subr.mxu0 0.0
    %1190 = vmatpush1.msra.mxu0 0.0
    %1191 = vmatprep.subr.mxu0 0.0
    %1192 = vmatpush1.msra.mxu0 0.0
    %1193 = vmatprep.subr.mxu0 0.0
    %1194 = vmatpush1.msra.mxu0 0.0
    %1195 = vmatprep.subr.mxu0 0.0
    %1196 = vmatpush1.msra.mxu0 0.0
    %1197 = vmatprep.subr.mxu0 0.0
    %1198 = vmatpush1.msra.mxu0 0.0
    %1199 = vmatprep.subr.mxu0 0.0
    %1200 = vmatpush1.msra.mxu0 0.0
    %1201 = vmatprep.subr.mxu0 0.0
    %1202 = vmatpush1.msra.mxu0 0.0
    %1203 = vmatprep.subr.mxu0 0.0
    %1204 = vmatpush1.msra.mxu0 0.0
    %1205 = vmatprep.subr.mxu0 0.0
    %1206 = vmatpush1.msra.mxu0 0.0
    %1207 = vmatprep.subr.mxu0 0.0
    %1208 = vmatpush1.msra.mxu0 0.0
    %1209 = vmatprep.subr.mxu0 0.0
    %1210 = vmatpush1.msra.mxu0 0.0
    %1211 = vmatprep.subr.mxu0 0.0
    %1212 = vmatpush1.msra.mxu0 0.0
    %1213 = vmatprep.subr.mxu0 0.0
    %1214 = vmatpush1.msra.mxu0 0.0
    %1215 = vmatprep.subr.mxu0 0.0
    %1216 = vmatpush1.msra.mxu0 0.0
    %1217 = vmatprep.subr.mxu0 0.0
    %1218 = vmatpush1.msra.mxu0 0.0
    %1219 = vmatprep.subr.mxu0 0.0
    %1220 = vmatpush1.msra.mxu0 0.0
    %1221 = vmatprep.mubr.f32.mxu0 0.0
    %1222 = vmatmul.mubr.f32.gmra.mrb[0].mxu0 %v1155
    %v1223 = vpop.f32.mrb[0].mxu0
    %v1224 = vadd.f32 0.0, %v1223
    %v1225 = vpop.f32.mrb[0].mxu0
    %1226 = vdwg.mxu0
    %s1227 = scalar_lea.vmem [#allocation2], 56
    %v1228 = vld [vmem:[%s1227] sm:$0xff]
    %s1229 = scalar_lea.vmem [#allocation5], 56
    %v1230 = vld [vmem:[%s1229] sm:$0xff]
    %s1231 = scalar_lea.vmem [#allocation7], 56
    %v1232 = vld [vmem:[%s1231] sm:$0xff]
    %v1234 = vsel %vm62, %v1228, 0
    %v1237 = vsel %vm62, %v1230, 0
    %1239 = vmatprep.subr.mxu0 0.0
    %1240 = vmatpush1.xpose.msra.mxu0 %v1237
    %1241 = vmatprep.subr.mxu0 0.0
    %1242 = vmatpush1.xpose.msra.mxu0 0.0
    %1243 = vmatprep.subr.mxu0 0.0
    %1244 = vmatpush1.xpose.msra.mxu0 0.0
    %1245 = vmatprep.subr.mxu0 0.0
    %1246 = vmatpush1.xpose.msra.mxu0 0.0
    %1247 = vmatprep.subr.mxu0 0.0
    %1248 = vmatpush1.xpose.msra.mxu0 0.0
    %1249 = vmatprep.subr.mxu0 0.0
    %1250 = vmatpush1.xpose.msra.mxu0 0.0
    %1251 = vmatprep.subr.mxu0 0.0
    %1252 = vmatpush1.xpose.msra.mxu0 0.0
    %1253 = vmatprep.subr.mxu0 0.0
    %1254 = vmatpush1.xpose.msra.mxu0 0.0
    %1255 = vmatprep.subr.mxu0 0.0
    %1256 = vmatpush1.xpose.msra.mxu0 0.0
    %1257 = vmatprep.subr.mxu0 0.0
    %1258 = vmatpush1.xpose.msra.mxu0 0.0
    %1259 = vmatprep.subr.mxu0 0.0
    %1260 = vmatpush1.xpose.msra.mxu0 0.0
    %1261 = vmatprep.subr.mxu0 0.0
    %1262 = vmatpush1.xpose.msra.mxu0 0.0
    %1263 = vmatprep.subr.mxu0 0.0
    %1264 = vmatpush1.xpose.msra.mxu0 0.0
    %1265 = vmatprep.subr.mxu0 0.0
    %1266 = vmatpush1.xpose.msra.mxu0 0.0
    %1267 = vmatprep.subr.mxu0 0.0
    %1268 = vmatpush1.xpose.msra.mxu0 0.0
    %1269 = vmatprep.subr.mxu0 0.0
    %1270 = vmatpush1.xpose.msra.mxu0 0.0
    %1271 = vmatprep.subr.mxu0 0.0
    %1272 = vmatpush1.xpose.msra.mxu0 0.0
    %1273 = vmatprep.subr.mxu0 0.0
    %1274 = vmatpush1.xpose.msra.mxu0 0.0
    %1275 = vmatprep.subr.mxu0 0.0
    %1276 = vmatpush1.xpose.msra.mxu0 0.0
    %1277 = vmatprep.subr.mxu0 0.0
    %1278 = vmatpush1.xpose.msra.mxu0 0.0
    %1279 = vmatprep.subr.mxu0 0.0
    %1280 = vmatpush1.xpose.msra.mxu0 0.0
    %1281 = vmatprep.subr.mxu0 0.0
    %1282 = vmatpush1.xpose.msra.mxu0 0.0
    %1283 = vmatprep.subr.mxu0 0.0
    %1284 = vmatpush1.xpose.msra.mxu0 0.0
    %1285 = vmatprep.subr.mxu0 0.0
    %1286 = vmatpush1.xpose.msra.mxu0 0.0
    %1287 = vmatprep.subr.mxu0 0.0
    %1288 = vmatpush1.xpose.msra.mxu0 0.0
    %1289 = vmatprep.subr.mxu0 0.0
    %1290 = vmatpush1.xpose.msra.mxu0 0.0
    %1291 = vmatprep.subr.mxu0 0.0
    %1292 = vmatpush1.xpose.msra.mxu0 0.0
    %1293 = vmatprep.subr.mxu0 0.0
    %1294 = vmatpush1.xpose.msra.mxu0 0.0
    %1295 = vmatprep.subr.mxu0 0.0
    %1296 = vmatpush1.xpose.msra.mxu0 0.0
    %1297 = vmatprep.subr.mxu0 0.0
    %1298 = vmatpush1.xpose.msra.mxu0 0.0
    %1299 = vmatprep.subr.mxu0 0.0
    %1300 = vmatpush1.xpose.msra.mxu0 0.0
    %1301 = vmatprep.subr.mxu0 0.0
    %1302 = vmatpush1.xpose.msra.mxu0 0.0
    %1303 = vmatprep.mubr.f32.mxu0 0.0
    %1304 = vmatmul.mubr.f32.gmra.mrb[0].mxu0 %v1234
    %v1305 = vpop.f32.mrb[0].mxu0
    %v1306 = vadd.f32 0.0, %v1305
    %v1307 = vpop.f32.mrb[0].mxu0
    %1308 = vdwg.mxu0
    %v1309 = vmul.f32 %v1306, 0.17677669
    %v1310 = vsel %vm140, %v1309, -inf
    %1311 = vmax.xlane.f32.xlu0 %v1310
    %v1312 = vpop.xlane.xlu0 %1311
    %v1313 = vsub.f32 %v1309, %v1312
    %v1314 = vmul.f32 %v1313, 1.442695
    %v1315 = vpow.pop %v1314
    %v1316 = vsel %vm140, %v1315, 0.0
    %1317 = vadd.xlane.f32.xlu0 %v1316
    %v1318 = vpop.xlane.xlu0 %1317
    %v1319 = vrcp.pop %v1318
    %v1320 = vmul.f32 %v1315, %v1319
    %v1322 = vsel %vm140, %v1320, 0
    %1324 = vmatprep.subr.mxu0 0.0
    %1325 = vmatpush1.msra.mxu0 %v1232
    %1326 = vmatprep.subr.mxu0 0.0
    %1327 = vmatpush1.msra.mxu0 0.0
    %1328 = vmatprep.subr.mxu0 0.0
    %1329 = vmatpush1.msra.mxu0 0.0
    %1330 = vmatprep.subr.mxu0 0.0
    %1331 = vmatpush1.msra.mxu0 0.0
    %1332 = vmatprep.subr.mxu0 0.0
    %1333 = vmatpush1.msra.mxu0 0.0
    %1334 = vmatprep.subr.mxu0 0.0
    %1335 = vmatpush1.msra.mxu0 0.0
    %1336 = vmatprep.subr.mxu0 0.0
    %1337 = vmatpush1.msra.mxu0 0.0
    %1338 = vmatprep.subr.mxu0 0.0
    %1339 = vmatpush1.msra.mxu0 0.0
    %1340 = vmatprep.subr.mxu0 0.0
    %1341 = vmatpush1.msra.mxu0 0.0
    %1342 = vmatprep.subr.mxu0 0.0
    %1343 = vmatpush1.msra.mxu0 0.0
    %1344 = vmatprep.subr.mxu0 0.0
    %1345 = vmatpush1.msra.mxu0 0.0
    %1346 = vmatprep.subr.mxu0 0.0
    %1347 = vmatpush1.msra.mxu0 0.0
    %1348 = vmatprep.subr.mxu0 0.0
    %1349 = vmatpush1.msra.mxu0 0.0
    %1350 = vmatprep.subr.mxu0 0.0
    %1351 = vmatpush1.msra.mxu0 0.0
    %1352 = vmatprep.subr.mxu0 0.0
    %1353 = vmatpush1.msra.mxu0 0.0
    %1354 = vmatprep.subr.mxu0 0.0
    %1355 = vmatpush1.msra.mxu0 0.0
    %1356 = vmatprep.subr.mxu0 0.0
    %1357 = vmatpush1.msra.mxu0 0.0
    %1358 = vmatprep.subr.mxu0 0.0
    %1359 = vmatpush1.msra.mxu0 0.0
    %1360 = vmatprep.subr.mxu0 0.0
    %1361 = vmatpush1.msra.mxu0 0.0
    %1362 = vmatprep.subr.mxu0 0.0
    %1363 = vmatpush1.msra.mxu0 0.0
    %1364 = vmatprep.subr.mxu0 0.0
    %1365 = vmatpush1.msra.mxu0 0.0
    %1366 = vmatprep.subr.mxu0 0.0
    %1367 = vmatpush1.msra.mxu0 0.0
    %1368 = vmatprep.subr.mxu0 0.0
    %1369 = vmatpush1.msra.mxu0 0.0
    %1370 = vmatprep.subr.mxu0 0.0
    %1371 = vmatpush1.msra.mxu0 0.0
    %1372 = vmatprep.subr.mxu0 0.0
    %1373 = vmatpush1.msra.mxu0 0.0
    %1374 = vmatprep.subr.mxu0 0.0
    %1375 = vmatpush1.msra.mxu0 0.0
    %1376 = vmatprep.subr.mxu0 0.0
    %1377 = vmatpush1.msra.mxu0 0.0
    %1378 = vmatprep.subr.mxu0 0.0
    %1379 = vmatpush1.msra.mxu0 0.0
    %1380 = vmatprep.subr.mxu0 0.0
    %1381 = vmatpush1.msra.mxu0 0.0
    %1382 = vmatprep.subr.mxu0 0.0
    %1383 = vmatpush1.msra.mxu0 0.0
    %1384 = vmatprep.subr.mxu0 0.0
    %1385 = vmatpush1.msra.mxu0 0.0
    %1386 = vmatprep.subr.mxu0 0.0
    %1387 = vmatpush1.msra.mxu0 0.0
    %1388 = vmatprep.mubr.f32.mxu0 0.0
    %1389 = vmatmul.mubr.f32.gmra.mrb[0].mxu0 %v1322
    %v1390 = vpop.f32.mrb[0].mxu0
    %v1391 = vadd.f32 0.0, %v1390
    %v1392 = vpop.f32.mrb[0].mxu0
    %1393 = vdwg.mxu0
    %1395 = vrot.lane.b32.xlu0 %v389, 32
    %v1396 = vpop.permute.xlu0 %1395
    %1399 = vrot.lane.b32.xlu0 %v556, 64
    %v1400 = vpop.permute.xlu0 %1399
    %1403 = vrot.lane.b32.xlu0 %v723, 96
    %v1404 = vpop.permute.xlu0 %1403
    %1407 = vrot.lane.b32.xlu0 %v1057, 32
    %v1408 = vpop.permute.xlu0 %1407
    %1411 = vrot.lane.b32.xlu0 %v1224, 64
    %v1412 = vpop.permute.xlu0 %1411
    %1415 = vrot.lane.b32.xlu0 %v1391, 96
    %v1416 = vpop.permute.xlu0 %1415
    %v1418 = vsel %vm62, %v222, %v1396
    %vm1419 = vcmask 523264
    %v1420 = vsel %vm1419, %v1418, %v1400
    %vm1421 = vcmask 785408
    %v1422 = vsel %vm1421, %v1420, %v1404
    %v1423 = vsel %vm62, %v890, %v1408
    %v1424 = vsel %vm1419, %v1423, %v1412
    %v1425 = vsel %vm1421, %v1424, %v1416
    %1427 = vrot.lane.b32.xlu0 %v307, 8
    %v1428 = vpop.permute.xlu0 %1427
    %1431 = vrot.lane.b32.xlu0 %v474, 16
    %v1432 = vpop.permute.xlu0 %1431
    %1435 = vrot.lane.b32.xlu0 %v641, 24
    %v1436 = vpop.permute.xlu0 %1435
    %1439 = vrot.lane.b32.xlu0 %v808, 32
    %v1440 = vpop.permute.xlu0 %1439
    %1443 = vrot.lane.b32.xlu0 %v975, 40
    %v1444 = vpop.permute.xlu0 %1443
    %1447 = vrot.lane.b32.xlu0 %v1142, 48
    %v1448 = vpop.permute.xlu0 %1447
    %1451 = vrot.lane.b32.xlu0 %v1309, 56
    %v1452 = vpop.permute.xlu0 %1451
    %v1454 = vsel %vm140, %v139, %v1428
    %vm1455 = vcmask 130048
    %v1456 = vsel %vm1455, %v1454, %v1432
    %vm1457 = vcmask 195584
    %v1458 = vsel %vm1457, %v1456, %v1436
    %v1459 = vsel %vm62, %v1458, %v1440
    %vm1460 = vcmask 326656
    %v1461 = vsel %vm1460, %v1459, %v1444
    %vm1462 = vcmask 392192
    %v1463 = vsel %vm1462, %v1461, %v1448
    %vm1464 = vcmask 457728
    %v1465 = vsel %vm1464, %v1463, %v1452
    %1466 = vst [vmem:[#allocation8] sm:$0xff] %v1422
    %1467 = vst [vmem:[#allocation8 + $0x8] sm:$0xff] %v1425
    %vm1468 = vcmask 523271
    %1469 = vst.msk [vmem:[#allocation9 - $0x7] sm:$0x80] %vm1468, %v1465
    // Predicated region
    $region26: #{tpu_custom_call.1} parent=1 // pred_check
      _
    $region27: #{tpu_custom_call.1} parent=1 // pred_check_branch
      %1471 = sbr.rel (0) target = $region29
    $region28: #{tpu_custom_call.1} parent=1 // pred_region
      %s1473 = ssub.s32 256, 256
      %1474 = vsyncadd [#allocation4], %s1473
      %s1476 = sshll.u32 [#allocation8], 4
      %s1477 = int_to_ptr.vmem [resolvable:$true] %s1476
      %1479 = dma.vmem_to_hbm [thread:$0]  %s1477, 256, %s3, [#allocation4]
    $region29: #{tpu_custom_call.1} parent=1 // pred_fallthru
      _
    // Predicated region
    $region30: #{tpu_custom_call.1} parent=1 // pred_check
      _
    $region31: #{tpu_custom_call.1} parent=1 // pred_check_branch
      %1481 = sbr.rel (0) target = $region33
    $region32: #{tpu_custom_call.1} parent=1 // pred_region
      %s1483 = ssub.s32 16, 16
      %1484 = vsyncadd [#allocation10], %s1483
      %s1486 = sshll.u32 [#allocation9], 4
      %s1487 = int_to_ptr.vmem [resolvable:$true] %s1486
      %1489 = dma.vmem_to_hbm [thread:$0]  %s1487, 16, %s4, [#allocation10]
    $region33: #{tpu_custom_call.1} parent=1 // pred_fallthru
      _
    // Predicated region
    $region34: #{tpu_custom_call.1} parent=1 // pred_check
      _
    $region35: #{tpu_custom_call.1} parent=1 // pred_check_branch
      %1491 = sbr.rel (0) target = $region37
    $region36: #{tpu_custom_call.1} parent=1 // pred_region
      %1492 = dma.done [#allocation4], 256
    $region37: #{tpu_custom_call.1} parent=1 // pred_fallthru
      _
    // Predicated region
    $region38: #{tpu_custom_call.1} parent=1 // pred_check
      _
    $region39: #{tpu_custom_call.1} parent=1 // pred_check_branch
      %1494 = sbr.rel (0) target = $region41
    $region40: #{tpu_custom_call.1} parent=1 // pred_region
      %1495 = dma.done [#allocation10], 16
    $region41: #{tpu_custom_call.1} parent=1 // pred_fallthru
      _
    %1496 = vsyncpa [#allocation3], 1
    %1497 = vsyncpa [#allocation6], 1
    %1498 = vsyncpa [#allocation4], 1
    %1499 = vsyncpa [#allocation10], 1

</llo_original>
